<compile_context>
chip_gen: v5e
topology: v5e:2x2
jax: 0.10.0
libtpu: 0.0.40
codegen_flags: <defaults>
</compile_context>

<pallas_src>
import functools
import math

import jax
import jax.numpy as jnp
import numpy as np
from jax import lax
from jax.experimental import pallas as pl
from jax.experimental.pallas import tpu as pltpu


# ----------------------------------------------------------------------------
# Pallas kernel 1: fused key_proj  (Conv1d k=3 + ReLU + Conv1d k=1)
# ----------------------------------------------------------------------------
def _key_proj_kernel(xp_ref, w3_ref, b3_ref, w1_ref, b1_ref, o_ref):
    T = o_ref.shape[1]
    xp = xp_ref[0].astype(jnp.float32)                    # (T+2, Cin), padded
    # k=3 conv as 3 shifted accumulating MXU dots on the same VMEM tile.
    h = jnp.dot(xp[0:T, :], w3_ref[0], preferred_element_type=jnp.float32)
    h = h + jnp.dot(xp[1:T + 1, :], w3_ref[1], preferred_element_type=jnp.float32)
    h = h + jnp.dot(xp[2:T + 2, :], w3_ref[2], preferred_element_type=jnp.float32)
    h = jnp.maximum(h + b3_ref[...], 0.0)                 # ReLU, stays in VMEM
    out = jnp.dot(h, w1_ref[...], preferred_element_type=jnp.float32) + b1_ref[...]
    o_ref[0] = out.astype(o_ref.dtype)


# ----------------------------------------------------------------------------
# Pallas kernel 2: fused query_proj (Conv k=3 + ReLU + Conv k=1 + ReLU + Conv k=1)
# ----------------------------------------------------------------------------
def _query_proj_kernel(xp_ref, w3_ref, b3_ref, w1_ref, b1_ref, w2_ref, b2_ref, o_ref):
    T = o_ref.shape[1]
    xp = xp_ref[0].astype(jnp.float32)                    # (T+2, Cin), padded
    h = jnp.dot(xp[0:T, :], w3_ref[0], preferred_element_type=jnp.float32)
    h = h + jnp.dot(xp[1:T + 1, :], w3_ref[1], preferred_element_type=jnp.float32)
    h = h + jnp.dot(xp[2:T + 2, :], w3_ref[2], preferred_element_type=jnp.float32)
    h = jnp.maximum(h + b3_ref[...], 0.0)                 # ReLU
    h = jnp.maximum(
        jnp.dot(h, w1_ref[...], preferred_element_type=jnp.float32) + b1_ref[...], 0.0)
    out = jnp.dot(h, w2_ref[...], preferred_element_type=jnp.float32) + b2_ref[...]
    o_ref[0] = out.astype(o_ref.dtype)


# ----------------------------------------------------------------------------
# Pallas kernel 3: pairwise squared distance + temperature + softmax over T2
# ----------------------------------------------------------------------------
def _dist_softmax_kernel(q_ref, k_ref, attn_ref, logp_ref, *, temperature):
    q = q_ref[0].astype(jnp.float32)                      # (tq, C)
    k = k_ref[0].astype(jnp.float32)                      # (T2, C)
    C = q.shape[-1]
    qsq = jnp.sum(q * q, axis=-1, keepdims=True)          # (tq, 1)
    # |k|^2 as a row vector directly via a ones-vector MXU dot (no XLU transpose).
    ksq = lax.dot_general(jnp.ones((1, C), jnp.float32), k * k,
                          dimension_numbers=(((1,), (1,)), ((), ())),
                          preferred_element_type=jnp.float32)   # (1, T2)
    # q @ k^T without materializing k^T (MXU consumes transposed RHS natively).
    qk = lax.dot_general(q, k, dimension_numbers=(((1,), (1,)), ((), ())),
                         preferred_element_type=jnp.float32)    # (tq, T2)
    # sum_c (q - k)^2, clamped at 0 to suppress cancellation noise.
    dist = jnp.maximum(qsq + ksq - 2.0 * qk, 0.0)
    logits = (-temperature) * dist
    logp_ref[0] = logits.astype(logp_ref.dtype)
    m = jnp.max(logits, axis=-1, keepdims=True)
    e = jnp.exp(logits - m)
    s = jnp.sum(e, axis=-1, keepdims=True)
    inv = pl.reciprocal(s, approx=True)                   # EUP slot (cheap)
    inv = inv * (2.0 - s * inv)                           # one Newton step -> ~f32
    attn_ref[0] = (e * inv).astype(attn_ref.dtype)


# ----------------------------------------------------------------------------
# Wrappers
# ----------------------------------------------------------------------------
def key_proj_fused(x_btc, w3_oik, b3, w1_oik, b1):
    """key_proj branch fused in one pallas_call.  x_btc: (B, T2, C_text)."""
    B, T, Cin = x_btc.shape
    Chid = w3_oik.shape[0]
    Catt = w1_oik.shape[0]
    xp = jnp.pad(x_btc, ((0, 0), (1, 1), (0, 0)))          # 'same' padding, read once
    w3 = jnp.transpose(w3_oik, (2, 1, 0))                  # (3, Cin, Chid)
    w1 = w1_oik[:, :, 0].T                                 # (Chid, Catt)
    return pl.pallas_call(
        _key_proj_kernel,
        out_shape=jax.ShapeDtypeStruct((B, T, Catt), x_btc.dtype),
        grid=(B,),
        in_specs=[
            pl.BlockSpec((1, T + 2, Cin), lambda b: (b, 0, 0)),
            pl.BlockSpec((3, Cin, Chid), lambda b: (0, 0, 0)),   # resident weights
            pl.BlockSpec((1, Chid), lambda b: (0, 0)),
            pl.BlockSpec((Chid, Catt), lambda b: (0, 0)),
            pl.BlockSpec((1, Catt), lambda b: (0, 0)),
        ],
        out_specs=pl.BlockSpec((1, T, Catt), lambda b: (b, 0, 0)),
        compiler_params=pltpu.CompilerParams(dimension_semantics=("parallel",)),
    )(xp, w3, b3.reshape(1, Chid), w1, b1.reshape(1, Catt))


def query_proj_fused(x_btc, w3_oik, b3, w1_oik, b1, w2_oik, b2):
    """query_proj branch fused in one pallas_call.  x_btc: (B, T1, C_mel)."""
    B, T, Cin = x_btc.shape
    Chid = w3_oik.shape[0]
    Cmid = w1_oik.shape[0]
    Catt = w2_oik.shape[0]
    xp = jnp.pad(x_btc, ((0, 0), (1, 1), (0, 0)))
    w3 = jnp.transpose(w3_oik, (2, 1, 0))                  # (3, Cin, Chid)
    w1 = w1_oik[:, :, 0].T                                 # (Chid, Cmid)
    w2 = w2_oik[:, :, 0].T                                 # (Cmid, Catt)
    return pl.pallas_call(
        _query_proj_kernel,
        out_shape=jax.ShapeDtypeStruct((B, T, Catt), x_btc.dtype),
        grid=(B,),
        in_specs=[
            pl.BlockSpec((1, T + 2, Cin), lambda b: (b, 0, 0)),
            pl.BlockSpec((3, Cin, Chid), lambda b: (0, 0, 0)),
            pl.BlockSpec((1, Chid), lambda b: (0, 0)),
            pl.BlockSpec((Chid, Cmid), lambda b: (0, 0)),
            pl.BlockSpec((1, Cmid), lambda b: (0, 0)),
            pl.BlockSpec((Cmid, Catt), lambda b: (0, 0)),
            pl.BlockSpec((1, Catt), lambda b: (0, 0)),
        ],
        out_specs=pl.BlockSpec((1, T, Catt), lambda b: (b, 0, 0)),
        compiler_params=pltpu.CompilerParams(dimension_semantics=("parallel",)),
    )(xp, w3, b3.reshape(1, Chid), w1, b1.reshape(1, Cmid), w2, b2.reshape(1, Catt))


def _pick_tq(T1):
    """T1 tile for the dist/softmax kernel: full if small, else a divisor tile."""
    if T1 <= 256:
        return T1
    for t in (256, 128, 64, 32, 16, 8):
        if T1 % t == 0:
            return t
    return T1


def dist_softmax(q_enc, k_enc, temperature):
    """q_enc: (B, T1, C), k_enc: (B, T2, C) -> (attn, logprob), each (B, T1, T2)."""
    B, T1, C = q_enc.shape
    T2 = k_enc.shape[1]
    tq = _pick_tq(T1)
    nq = T1 // tq
    return pl.pallas_call(
        functools.partial(_dist_softmax_kernel, temperature=float(temperature)),
        out_shape=(
            jax.ShapeDtypeStruct((B, T1, T2), jnp.float32),
            jax.ShapeDtypeStruct((B, T1, T2), jnp.float32),   # keep logprob in f32
        ),
        grid=(B, nq),
        in_specs=[
            pl.BlockSpec((1, tq, C), lambda b, i: (b, i, 0)),
            pl.BlockSpec((1, T2, C), lambda b, i: (b, 0, 0)),  # keys resident per batch
        ],
        out_specs=(
            pl.BlockSpec((1, tq, T2), lambda b, i: (b, i, 0)),
            pl.BlockSpec((1, tq, T2), lambda b, i: (b, i, 0)),
        ),
        compiler_params=pltpu.CompilerParams(
            dimension_semantics=("parallel", "parallel")),
    )(q_enc, k_enc)


# ----------------------------------------------------------------------------
# Parameter construction (deterministic, mirrors ConvNorm xavier_uniform init)
# ----------------------------------------------------------------------------
def _make_conv_params(key, c_out, c_in, k, gain):
    wkey, bkey = jax.random.split(key)
    fan_in = c_in * k
    fan_out = c_out * k
    bound = gain * math.sqrt(6.0 / (fan_in + fan_out))
    w = jax.random.uniform(wkey, (c_out, c_in, k), jnp.float32, -bound, bound)
    bbound = 1.0 / math.sqrt(fan_in)
    b = jax.random.uniform(bkey, (c_out,), jnp.float32, -bbound, bbound)
    return w, b


def make_params(key, n_mel_channels, n_text_channels, n_att_channels):
    ks = jax.random.split(key, 5)
    relu_gain = math.sqrt(2.0)
    return {
        # key_proj: Conv(text, 2*text, k=3, relu-gain) -> ReLU -> Conv(2*text, att, k=1)
        "key0": _make_conv_params(ks[0], 2 * n_text_channels, n_text_channels, 3, relu_gain),
        "key1": _make_conv_params(ks[1], n_att_channels, 2 * n_text_channels, 1, 1.0),
        # query_proj: Conv(mel, 2*mel, k=3, relu-gain) -> ReLU -> Conv(2*mel, mel, k=1)
        #             -> ReLU -> Conv(mel, att, k=1)
        "qry0": _make_conv_params(ks[2], 2 * n_mel_channels, n_mel_channels, 3, relu_gain),
        "qry1": _make_conv_params(ks[3], n_mel_channels, 2 * n_mel_channels, 1, 1.0),
        "qry2": _make_conv_params(ks[4], n_att_channels, n_mel_channels, 1, 1.0),
    }


# ----------------------------------------------------------------------------
# AlignmentEncoder forward
# ----------------------------------------------------------------------------
def alignment_encoder_forward(params, queries, keys, temperature=0.0005):
    """queries: (B, C_mel, T1), keys: (B, C_text, T2)  (PyTorch NCL layout).

    Returns (attn, attn_logprob), each of shape (B, 1, T1, T2)."""
    # TODO(synk): mask / attn_prior branches of the PyTorch forward are not
    # implemented (test exercises mask=None, attn_prior=None).
    q = jnp.transpose(queries, (0, 2, 1))  # (B, T1, C_mel)
    k = jnp.transpose(keys, (0, 2, 1))     # (B, T2, C_text)

    keys_enc = key_proj_fused(k, *params["key0"], *params["key1"])        # (B, T2, C_att)
    queries_enc = query_proj_fused(q, *params["qry0"], *params["qry1"],
                                   *params["qry2"])                        # (B, T1, C_att)

    attn, attn_logprob = dist_softmax(queries_enc, keys_enc, temperature)
    return attn[:, None], attn_logprob[:, None]


# ----------------------------------------------------------------------------
# Pure-JAX reference (for correctness check only)
# ----------------------------------------------------------------------------
def _reference_forward(params, queries, keys, temperature=0.0005):
    def conv(x, w, b, pad):
        y = jax.lax.conv_general_dilated(
            x, w, window_strides=(1,), padding=[(pad, pad)],
            dimension_numbers=("NCH", "OIH", "NCH"))
        return y + b[None, :, None]

    kh = jax.nn.relu(conv(keys, *params["key0"], pad=1))
    keys_enc = conv(kh, *params["key1"], pad=0)
    qh = jax.nn.relu(conv(queries, *params["qry0"], pad=1))
    qh = jax.nn.relu(conv(qh, *params["qry1"], pad=0))
    queries_enc = conv(qh, *params["qry2"], pad=0)
    diff2 = (queries_enc[:, :, :, None] - keys_enc[:, :, None]) ** 2
    attn = -temperature * diff2.sum(1, keepdims=True)
    attn_logprob = attn
    attn = jax.nn.softmax(attn, axis=3)
    return attn, attn_logprob


if __name__ == "__main__":
    B = 2
    n_mel_channels = 16
    n_text_channels = 32
    n_att_channels = 16
    T1 = 16   # mel length
    T2 = 8    # text length
    temperature = 0.0005

    key = jax.random.PRNGKey(0)
    pkey, qkey, kkey = jax.random.split(key, 3)
    params = make_params(pkey, n_mel_channels, n_text_channels, n_att_channels)

    queries = jax.random.normal(qkey, (B, n_mel_channels, T1), jnp.float32)
    keys = jax.random.normal(kkey, (B, n_text_channels, T2), jnp.float32)

    fwd = jax.jit(functools.partial(alignment_encoder_forward, temperature=temperature))
    attn, attn_logprob = fwd(params, queries, keys)
    attn = jax.block_until_ready(attn)
    attn_logprob = jax.block_until_ready(attn_logprob)

    assert attn.shape == (B, 1, T1, T2)
    assert attn_logprob.shape == (B, 1, T1, T2)
    # softmax rows sum to 1 (Newton-refined reciprocal keeps this tight)
    np.testing.assert_allclose(np.asarray(attn.sum(axis=3)), 1.0, rtol=1e-4, atol=1e-4)

    # compare against pure-JAX reference
    ref_attn, ref_logprob = _reference_forward(params, queries, keys, temperature)
    np.testing.assert_allclose(np.asarray(attn), np.asarray(ref_attn), rtol=1e-4, atol=1e-4)
    np.testing.assert_allclose(np.asarray(attn_logprob), np.asarray(ref_logprob),
                               rtol=1e-4, atol=1e-4)

    print("KERNEL_OK")
</pallas_src>

<mosaic_0001>
module attributes {stable_mosaic.version = 11 : i64} {
  func.func @_key_proj_kernel(%arg0: i32, %arg1: memref<1x10x32xf32, #tpu.memory_space<vmem>>, %arg2: memref<3x32x64xf32, #tpu.memory_space<vmem>>, %arg3: memref<1x64xf32, #tpu.memory_space<vmem>>, %arg4: memref<64x16xf32, #tpu.memory_space<vmem>>, %arg5: memref<1x16xf32, #tpu.memory_space<vmem>>, %arg6: memref<1x8x16xf32, #tpu.memory_space<vmem>>) attributes {dimension_semantics = [#tpu.dimension_semantics<parallel>], iteration_bounds = array<i64: 2>, scalar_prefetch = 0 : i64, scratch_operands = 0 : i64, tpu.core_type = #tpu.core_type<tc>, window_params = [{transform_indices = @transform_0, window_bounds = array<i64: 1, 10, 32>}, {pipeline_mode = #tpu.pipeline_mode<synchronous>, transform_indices = @transform_1, window_bounds = array<i64: 3, 32, 64>}, {pipeline_mode = #tpu.pipeline_mode<synchronous>, transform_indices = @transform_2, window_bounds = array<i64: 1, 64>}, {pipeline_mode = #tpu.pipeline_mode<synchronous>, transform_indices = @transform_3, window_bounds = array<i64: 64, 16>}, {pipeline_mode = #tpu.pipeline_mode<synchronous>, transform_indices = @transform_4, window_bounds = array<i64: 1, 16>}, {transform_indices = @transform_5, window_bounds = array<i64: 1, 8, 16>}]} {
    %c0 = arith.constant 0 : index
    %c0_0 = arith.constant 0 : index
    %c0_1 = arith.constant 0 : index
    %0 = vector.load %arg1[%c0, %c0_0, %c0_1] : memref<1x10x32xf32, #tpu.memory_space<vmem>>, vector<1x10x32xf32>
    %1 = vector.shape_cast %0 : vector<1x10x32xf32> to vector<10x32xf32>
    %2 = vector.extract_strided_slice %1 {offsets = [0, 0], sizes = [8, 32], strides = [1, 1]} : vector<10x32xf32> to vector<8x32xf32>
    %c0_2 = arith.constant 0 : index
    %c0_3 = arith.constant 0 : index
    %c0_4 = arith.constant 0 : index
    %3 = vector.load %arg2[%c0_2, %c0_3, %c0_4] : memref<3x32x64xf32, #tpu.memory_space<vmem>>, vector<1x32x64xf32>
    %4 = vector.shape_cast %3 : vector<1x32x64xf32> to vector<32x64xf32>
    %cst = arith.constant dense<0.000000e+00> : vector<8x64xf32>
    %5 = tpu.matmul %2, %4, %cst {dimension_numbers = #tpu.dot_dimension_numbers<[1], [0], [0], [1], [0, 0, 1, 1], [], []>} : vector<8x32xf32>, vector<32x64xf32>, vector<8x64xf32> -> vector<8x64xf32>
    %6 = vector.extract_strided_slice %1 {offsets = [1, 0], sizes = [8, 32], strides = [1, 1]} : vector<10x32xf32> to vector<8x32xf32>
    %c1 = arith.constant 1 : index
    %c0_5 = arith.constant 0 : index
    %c0_6 = arith.constant 0 : index
    %7 = vector.load %arg2[%c1, %c0_5, %c0_6] : memref<3x32x64xf32, #tpu.memory_space<vmem>>, vector<1x32x64xf32>
    %8 = vector.shape_cast %7 : vector<1x32x64xf32> to vector<32x64xf32>
    %cst_7 = arith.constant dense<0.000000e+00> : vector<8x64xf32>
    %9 = tpu.matmul %6, %8, %cst_7 {dimension_numbers = #tpu.dot_dimension_numbers<[1], [0], [0], [1], [0, 0, 1, 1], [], []>} : vector<8x32xf32>, vector<32x64xf32>, vector<8x64xf32> -> vector<8x64xf32>
    %10 = arith.addf %5, %9 : vector<8x64xf32>
    %11 = vector.extract_strided_slice %1 {offsets = [2, 0], sizes = [8, 32], strides = [1, 1]} : vector<10x32xf32> to vector<8x32xf32>
    %c2 = arith.constant 2 : index
    %c0_8 = arith.constant 0 : index
    %c0_9 = arith.constant 0 : index
    %12 = vector.load %arg2[%c2, %c0_8, %c0_9] : memref<3x32x64xf32, #tpu.memory_space<vmem>>, vector<1x32x64xf32>
    %13 = vector.shape_cast %12 : vector<1x32x64xf32> to vector<32x64xf32>
    %cst_10 = arith.constant dense<0.000000e+00> : vector<8x64xf32>
    %14 = tpu.matmul %11, %13, %cst_10 {dimension_numbers = #tpu.dot_dimension_numbers<[1], [0], [0], [1], [0, 0, 1, 1], [], []>} : vector<8x32xf32>, vector<32x64xf32>, vector<8x64xf32> -> vector<8x64xf32>
    %15 = arith.addf %10, %14 : vector<8x64xf32>
    %c0_11 = arith.constant 0 : index
    %c0_12 = arith.constant 0 : index
    %16 = vector.load %arg3[%c0_11, %c0_12] : memref<1x64xf32, #tpu.memory_space<vmem>>, vector<1x64xf32>
    %17 = vector.broadcast %16 : vector<1x64xf32> to vector<8x64xf32>
    %18 = arith.addf %15, %17 : vector<8x64xf32>
    %cst_13 = arith.constant 0.000000e+00 : f32
    %19 = vector.broadcast %cst_13 : f32 to vector<8x64xf32>
    %20 = arith.maximumf %18, %19 : vector<8x64xf32>
    %c0_14 = arith.constant 0 : index
    %c0_15 = arith.constant 0 : index
    %21 = vector.load %arg4[%c0_14, %c0_15] : memref<64x16xf32, #tpu.memory_space<vmem>>, vector<64x16xf32>
    %cst_16 = arith.constant dense<0.000000e+00> : vector<8x16xf32>
    %22 = tpu.matmul %20, %21, %cst_16 {dimension_numbers = #tpu.dot_dimension_numbers<[1], [0], [0], [1], [0, 0, 1, 1], [], []>} : vector<8x64xf32>, vector<64x16xf32>, vector<8x16xf32> -> vector<8x16xf32>
    %c0_17 = arith.constant 0 : index
    %c0_18 = arith.constant 0 : index
    %23 = vector.load %arg5[%c0_17, %c0_18] : memref<1x16xf32, #tpu.memory_space<vmem>>, vector<1x16xf32>
    %24 = vector.broadcast %23 : vector<1x16xf32> to vector<8x16xf32>
    %25 = arith.addf %22, %24 : vector<8x16xf32>
    %c0_19 = arith.constant 0 : index
    %c0_20 = arith.constant 0 : index
    %c0_21 = arith.constant 0 : index
    %26 = vector.load %arg6[%c0_19, %c0_20, %c0_21] : memref<1x8x16xf32, #tpu.memory_space<vmem>>, vector<1x8x16xf32>
    %27 = vector.shape_cast %26 : vector<1x8x16xf32> to vector<8x16xf32>
    %28 = vector.shape_cast %25 : vector<8x16xf32> to vector<1x8x16xf32>
    tpu.vector_store %arg6[%c0_19, %c0_20, %c0_21], %28 {strides = array<i32>} : memref<1x8x16xf32, #tpu.memory_space<vmem>>, vector<1x8x16xf32>,
    return
  }
  func.func @transform_0(%arg0: i32) -> (i32, i32, i32) {
    %c0_i32 = arith.constant 0 : i32
    %c0_i32_0 = arith.constant 0 : i32
    %c0_i32_1 = arith.constant 0 : i32
    return %arg0, %c0_i32, %c0_i32_0 : i32, i32, i32
  }
  func.func @transform_1(%arg0: i32) -> (i32, i32, i32) {
    %c0_i32 = arith.constant 0 : i32
    %c0_i32_0 = arith.constant 0 : i32
    %c0_i32_1 = arith.constant 0 : i32
    %c0_i32_2 = arith.constant 0 : i32
    return %c0_i32, %c0_i32_0, %c0_i32_1 : i32, i32, i32
  }
  func.func @transform_2(%arg0: i32) -> (i32, i32) {
    %c0_i32 = arith.constant 0 : i32
    %c0_i32_0 = arith.constant 0 : i32
    %c0_i32_1 = arith.constant 0 : i32
    return %c0_i32, %c0_i32_0 : i32, i32
  }
  func.func @transform_3(%arg0: i32) -> (i32, i32) {
    %c0_i32 = arith.constant 0 : i32
    %c0_i32_0 = arith.constant 0 : i32
    %c0_i32_1 = arith.constant 0 : i32
    return %c0_i32, %c0_i32_0 : i32, i32
  }
  func.func @transform_4(%arg0: i32) -> (i32, i32) {
    %c0_i32 = arith.constant 0 : i32
    %c0_i32_0 = arith.constant 0 : i32
    %c0_i32_1 = arith.constant 0 : i32
    return %c0_i32, %c0_i32_0 : i32, i32
  }
  func.func @transform_5(%arg0: i32) -> (i32, i32, i32) {
    %c0_i32 = arith.constant 0 : i32
    %c0_i32_0 = arith.constant 0 : i32
    %c0_i32_1 = arith.constant 0 : i32
    return %arg0, %c0_i32, %c0_i32_0 : i32, i32, i32
  }
}

module attributes {stable_mosaic.version = 11 : i64} {
  func.func @_dist_softmax_kernel(%arg0: i32, %arg1: i32, %arg2: memref<1x16x16xf32, #tpu.memory_space<vmem>>, %arg3: memref<1x8x16xf32, #tpu.memory_space<vmem>>, %arg4: memref<1x16x8xf32, #tpu.memory_space<vmem>>, %arg5: memref<1x16x8xf32, #tpu.memory_space<vmem>>) attributes {dimension_semantics = [#tpu.dimension_semantics<parallel>, #tpu.dimension_semantics<parallel>], iteration_bounds = array<i64: 2, 1>, scalar_prefetch = 0 : i64, scratch_operands = 0 : i64, tpu.core_type = #tpu.core_type<tc>, window_params = [{transform_indices = @transform_0, window_bounds = array<i64: 1, 16, 16>}, {transform_indices = @transform_1, window_bounds = array<i64: 1, 8, 16>}, {transform_indices = @transform_2, window_bounds = array<i64: 1, 16, 8>}, {transform_indices = @transform_3, window_bounds = array<i64: 1, 16, 8>}]} {
    %c0 = arith.constant 0 : index
    %c0_0 = arith.constant 0 : index
    %c0_1 = arith.constant 0 : index
    %0 = vector.load %arg2[%c0, %c0_0, %c0_1] : memref<1x16x16xf32, #tpu.memory_space<vmem>>, vector<1x16x16xf32>
    %1 = vector.shape_cast %0 : vector<1x16x16xf32> to vector<16x16xf32>
    %c0_2 = arith.constant 0 : index
    %c0_3 = arith.constant 0 : index
    %c0_4 = arith.constant 0 : index
    %2 = vector.load %arg3[%c0_2, %c0_3, %c0_4] : memref<1x8x16xf32, #tpu.memory_space<vmem>>, vector<1x8x16xf32>
    %3 = vector.shape_cast %2 : vector<1x8x16xf32> to vector<8x16xf32>
    %4 = arith.mulf %1, %1 : vector<16x16xf32>
    %cst = arith.constant dense<0.000000e+00> : vector<16xf32>
    %5 = vector.multi_reduction <add>, %4, %cst [1] : vector<16x16xf32> to vector<16xf32>
    %6 = vector.shape_cast %5 : vector<16xf32> to vector<16x1xf32>
    %cst_5 = arith.constant 1.000000e+00 : f32
    %7 = vector.broadcast %cst_5 : f32 to vector<1x16xf32>
    %8 = arith.mulf %3, %3 : vector<8x16xf32>
    %cst_6 = arith.constant dense<0.000000e+00> : vector<1x8xf32>
    %9 = tpu.matmul %7, %8, %cst_6 {dimension_numbers = #tpu.dot_dimension_numbers<[1], [1], [0], [0], [0, 0, 1, 0], [], []>} : vector<1x16xf32>, vector<8x16xf32>, vector<1x8xf32> -> vector<1x8xf32>
    %cst_7 = arith.constant dense<0.000000e+00> : vector<16x8xf32>
    %10 = tpu.matmul %1, %3, %cst_7 {dimension_numbers = #tpu.dot_dimension_numbers<[1], [1], [0], [0], [0, 0, 1, 0], [], []>} : vector<16x16xf32>, vector<8x16xf32>, vector<16x8xf32> -> vector<16x8xf32>
    %11 = vector.broadcast %6 : vector<16x1xf32> to vector<16x8xf32>
    %12 = vector.broadcast %9 : vector<1x8xf32> to vector<16x8xf32>
    %13 = arith.addf %11, %12 : vector<16x8xf32>
    %cst_8 = arith.constant 2.000000e+00 : f32
    %14 = vector.broadcast %cst_8 : f32 to vector<16x8xf32>
    %15 = arith.mulf %14, %10 : vector<16x8xf32>
    %16 = arith.subf %13, %15 : vector<16x8xf32>
    %cst_9 = arith.constant 0.000000e+00 : f32
    %17 = vector.broadcast %cst_9 : f32 to vector<16x8xf32>
    %18 = arith.maximumf %16, %17 : vector<16x8xf32>
    %cst_10 = arith.constant -5.000000e-04 : f32
    %19 = vector.broadcast %cst_10 : f32 to vector<16x8xf32>
    %20 = arith.mulf %19, %18 : vector<16x8xf32>
    %c0_11 = arith.constant 0 : index
    %c0_12 = arith.constant 0 : index
    %c0_13 = arith.constant 0 : index
    %21 = vector.load %arg5[%c0_11, %c0_12, %c0_13] : memref<1x16x8xf32, #tpu.memory_space<vmem>>, vector<1x16x8xf32>
    %22 = vector.shape_cast %21 : vector<1x16x8xf32> to vector<16x8xf32>
    %23 = vector.shape_cast %20 : vector<16x8xf32> to vector<1x16x8xf32>
    tpu.vector_store %arg5[%c0_11, %c0_12, %c0_13], %23 {strides = array<i32>} : memref<1x16x8xf32, #tpu.memory_space<vmem>>, vector<1x16x8xf32>,
    %cst_14 = arith.constant dense<0xFF800000> : vector<16xf32>
    %24 = vector.multi_reduction <maximumf>, %20, %cst_14 [1] : vector<16x8xf32> to vector<16xf32>
    %25 = vector.shape_cast %24 : vector<16xf32> to vector<16x1xf32>
    %26 = vector.broadcast %25 : vector<16x1xf32> to vector<16x8xf32>
    %27 = arith.subf %20, %26 : vector<16x8xf32>
    %28 = math.exp %27 : vector<16x8xf32>
    %cst_15 = arith.constant dense<0.000000e+00> : vector<16xf32>
    %29 = vector.multi_reduction <add>, %28, %cst_15 [1] : vector<16x8xf32> to vector<16xf32>
    %30 = vector.shape_cast %29 : vector<16xf32> to vector<16x1xf32>
    %31 = tpu.reciprocal %30 {approx = true} : vector<16x1xf32> -> vector<16x1xf32>
    %32 = arith.mulf %30, %31 : vector<16x1xf32>
    %cst_16 = arith.constant 2.000000e+00 : f32
    %33 = vector.broadcast %cst_16 : f32 to vector<16x1xf32>
    %34 = arith.subf %33, %32 : vector<16x1xf32>
    %35 = arith.mulf %31, %34 : vector<16x1xf32>
    %36 = vector.broadcast %35 : vector<16x1xf32> to vector<16x8xf32>
    %37 = arith.mulf %28, %36 : vector<16x8xf32>
    %c0_17 = arith.constant 0 : index
    %c0_18 = arith.constant 0 : index
    %c0_19 = arith.constant 0 : index
    %38 = vector.load %arg4[%c0_17, %c0_18, %c0_19] : memref<1x16x8xf32, #tpu.memory_space<vmem>>, vector<1x16x8xf32>
    %39 = vector.shape_cast %38 : vector<1x16x8xf32> to vector<16x8xf32>
    %40 = vector.shape_cast %37 : vector<16x8xf32> to vector<1x16x8xf32>
    tpu.vector_store %arg4[%c0_17, %c0_18, %c0_19], %40 {strides = array<i32>} : memref<1x16x8xf32, #tpu.memory_space<vmem>>, vector<1x16x8xf32>,
    return
  }
  func.func @transform_0(%arg0: i32, %arg1: i32) -> (i32, i32, i32) {
    %c0_i32 = arith.constant 0 : i32
    %c0_i32_0 = arith.constant 0 : i32
    return %arg0, %arg1, %c0_i32 : i32, i32, i32
  }
  func.func @transform_1(%arg0: i32, %arg1: i32) -> (i32, i32, i32) {
    %c0_i32 = arith.constant 0 : i32
    %c0_i32_0 = arith.constant 0 : i32
    %c0_i32_1 = arith.constant 0 : i32
    return %arg0, %c0_i32, %c0_i32_0 : i32, i32, i32
  }
  func.func @transform_2(%arg0: i32, %arg1: i32) -> (i32, i32, i32) {
    %c0_i32 = arith.constant 0 : i32
    %c0_i32_0 = arith.constant 0 : i32
    return %arg0, %arg1, %c0_i32 : i32, i32, i32
  }
  func.func @transform_3(%arg0: i32, %arg1: i32) -> (i32, i32, i32) {
    %c0_i32 = arith.constant 0 : i32
    %c0_i32_0 = arith.constant 0 : i32
    return %arg0, %arg1, %c0_i32 : i32, i32, i32
  }
}

module attributes {stable_mosaic.version = 11 : i64} {
  func.func @_query_proj_kernel(%arg0: i32, %arg1: memref<1x18x16xf32, #tpu.memory_space<vmem>>, %arg2: memref<3x16x32xf32, #tpu.memory_space<vmem>>, %arg3: memref<1x32xf32, #tpu.memory_space<vmem>>, %arg4: memref<32x16xf32, #tpu.memory_space<vmem>>, %arg5: memref<1x16xf32, #tpu.memory_space<vmem>>, %arg6: memref<16x16xf32, #tpu.memory_space<vmem>>, %arg7: memref<1x16xf32, #tpu.memory_space<vmem>>, %arg8: memref<1x16x16xf32, #tpu.memory_space<vmem>>) attributes {dimension_semantics = [#tpu.dimension_semantics<parallel>], iteration_bounds = array<i64: 2>, scalar_prefetch = 0 : i64, scratch_operands = 0 : i64, tpu.core_type = #tpu.core_type<tc>, window_params = [{transform_indices = @transform_0, window_bounds = array<i64: 1, 18, 16>}, {pipeline_mode = #tpu.pipeline_mode<synchronous>, transform_indices = @transform_1, window_bounds = array<i64: 3, 16, 32>}, {pipeline_mode = #tpu.pipeline_mode<synchronous>, transform_indices = @transform_2, window_bounds = array<i64: 1, 32>}, {pipeline_mode = #tpu.pipeline_mode<synchronous>, transform_indices = @transform_3, window_bounds = array<i64: 32, 16>}, {pipeline_mode = #tpu.pipeline_mode<synchronous>, transform_indices = @transform_4, window_bounds = array<i64: 1, 16>}, {pipeline_mode = #tpu.pipeline_mode<synchronous>, transform_indices = @transform_5, window_bounds = array<i64: 16, 16>}, {pipeline_mode = #tpu.pipeline_mode<synchronous>, transform_indices = @transform_6, window_bounds = array<i64: 1, 16>}, {transform_indices = @transform_7, window_bounds = array<i64: 1, 16, 16>}]} {
    %c0 = arith.constant 0 : index
    %c0_0 = arith.constant 0 : index
    %c0_1 = arith.constant 0 : index
    %0 = vector.load %arg1[%c0, %c0_0, %c0_1] : memref<1x18x16xf32, #tpu.memory_space<vmem>>, vector<1x18x16xf32>
    %1 = vector.shape_cast %0 : vector<1x18x16xf32> to vector<18x16xf32>
    %2 = vector.extract_strided_slice %1 {offsets = [0, 0], sizes = [16, 16], strides = [1, 1]} : vector<18x16xf32> to vector<16x16xf32>
    %c0_2 = arith.constant 0 : index
    %c0_3 = arith.constant 0 : index
    %c0_4 = arith.constant 0 : index
    %3 = vector.load %arg2[%c0_2, %c0_3, %c0_4] : memref<3x16x32xf32, #tpu.memory_space<vmem>>, vector<1x16x32xf32>
    %4 = vector.shape_cast %3 : vector<1x16x32xf32> to vector<16x32xf32>
    %cst = arith.constant dense<0.000000e+00> : vector<16x32xf32>
    %5 = tpu.matmul %2, %4, %cst {dimension_numbers = #tpu.dot_dimension_numbers<[1], [0], [0], [1], [0, 0, 1, 1], [], []>} : vector<16x16xf32>, vector<16x32xf32>, vector<16x32xf32> -> vector<16x32xf32>
    %6 = vector.extract_strided_slice %1 {offsets = [1, 0], sizes = [16, 16], strides = [1, 1]} : vector<18x16xf32> to vector<16x16xf32>
    %c1 = arith.constant 1 : index
    %c0_5 = arith.constant 0 : index
    %c0_6 = arith.constant 0 : index
    %7 = vector.load %arg2[%c1, %c0_5, %c0_6] : memref<3x16x32xf32, #tpu.memory_space<vmem>>, vector<1x16x32xf32>
    %8 = vector.shape_cast %7 : vector<1x16x32xf32> to vector<16x32xf32>
    %cst_7 = arith.constant dense<0.000000e+00> : vector<16x32xf32>
    %9 = tpu.matmul %6, %8, %cst_7 {dimension_numbers = #tpu.dot_dimension_numbers<[1], [0], [0], [1], [0, 0, 1, 1], [], []>} : vector<16x16xf32>, vector<16x32xf32>, vector<16x32xf32> -> vector<16x32xf32>
    %10 = arith.addf %5, %9 : vector<16x32xf32>
    %11 = vector.extract_strided_slice %1 {offsets = [2, 0], sizes = [16, 16], strides = [1, 1]} : vector<18x16xf32> to vector<16x16xf32>
    %c2 = arith.constant 2 : index
    %c0_8 = arith.constant 0 : index
    %c0_9 = arith.constant 0 : index
    %12 = vector.load %arg2[%c2, %c0_8, %c0_9] : memref<3x16x32xf32, #tpu.memory_space<vmem>>, vector<1x16x32xf32>
    %13 = vector.shape_cast %12 : vector<1x16x32xf32> to vector<16x32xf32>
    %cst_10 = arith.constant dense<0.000000e+00> : vector<16x32xf32>
    %14 = tpu.matmul %11, %13, %cst_10 {dimension_numbers = #tpu.dot_dimension_numbers<[1], [0], [0], [1], [0, 0, 1, 1], [], []>} : vector<16x16xf32>, vector<16x32xf32>, vector<16x32xf32> -> vector<16x32xf32>
    %15 = arith.addf %10, %14 : vector<16x32xf32>
    %c0_11 = arith.constant 0 : index
    %c0_12 = arith.constant 0 : index
    %16 = vector.load %arg3[%c0_11, %c0_12] : memref<1x32xf32, #tpu.memory_space<vmem>>, vector<1x32xf32>
    %17 = vector.broadcast %16 : vector<1x32xf32> to vector<16x32xf32>
    %18 = arith.addf %15, %17 : vector<16x32xf32>
    %cst_13 = arith.constant 0.000000e+00 : f32
    %19 = vector.broadcast %cst_13 : f32 to vector<16x32xf32>
    %20 = arith.maximumf %18, %19 : vector<16x32xf32>
    %c0_14 = arith.constant 0 : index
    %c0_15 = arith.constant 0 : index
    %21 = vector.load %arg4[%c0_14, %c0_15] : memref<32x16xf32, #tpu.memory_space<vmem>>, vector<32x16xf32>
    %cst_16 = arith.constant dense<0.000000e+00> : vector<16x16xf32>
    %22 = tpu.matmul %20, %21, %cst_16 {dimension_numbers = #tpu.dot_dimension_numbers<[1], [0], [0], [1], [0, 0, 1, 1], [], []>} : vector<16x32xf32>, vector<32x16xf32>, vector<16x16xf32> -> vector<16x16xf32>
    %c0_17 = arith.constant 0 : index
    %c0_18 = arith.constant 0 : index
    %23 = vector.load %arg5[%c0_17, %c0_18] : memref<1x16xf32, #tpu.memory_space<vmem>>, vector<1x16xf32>
    %24 = vector.broadcast %23 : vector<1x16xf32> to vector<16x16xf32>
    %25 = arith.addf %22, %24 : vector<16x16xf32>
    %cst_19 = arith.constant 0.000000e+00 : f32
    %26 = vector.broadcast %cst_19 : f32 to vector<16x16xf32>
    %27 = arith.maximumf %25, %26 : vector<16x16xf32>
    %c0_20 = arith.constant 0 : index
    %c0_21 = arith.constant 0 : index
    %28 = vector.load %arg6[%c0_20, %c0_21] : memref<16x16xf32, #tpu.memory_space<vmem>>, vector<16x16xf32>
    %cst_22 = arith.constant dense<0.000000e+00> : vector<16x16xf32>
    %29 = tpu.matmul %27, %28, %cst_22 {dimension_numbers = #tpu.dot_dimension_numbers<[1], [0], [0], [1], [0, 0, 1, 1], [], []>} : vector<16x16xf32>, vector<16x16xf32>, vector<16x16xf32> -> vector<16x16xf32>
    %c0_23 = arith.constant 0 : index
    %c0_24 = arith.constant 0 : index
    %30 = vector.load %arg7[%c0_23, %c0_24] : memref<1x16xf32, #tpu.memory_space<vmem>>, vector<1x16xf32>
    %31 = vector.broadcast %30 : vector<1x16xf32> to vector<16x16xf32>
    %32 = arith.addf %29, %31 : vector<16x16xf32>
    %c0_25 = arith.constant 0 : index
    %c0_26 = arith.constant 0 : index
    %c0_27 = arith.constant 0 : index
    %33 = vector.load %arg8[%c0_25, %c0_26, %c0_27] : memref<1x16x16xf32, #tpu.memory_space<vmem>>, vector<1x16x16xf32>
    %34 = vector.shape_cast %33 : vector<1x16x16xf32> to vector<16x16xf32>
    %35 = vector.shape_cast %32 : vector<16x16xf32> to vector<1x16x16xf32>
    tpu.vector_store %arg8[%c0_25, %c0_26, %c0_27], %35 {strides = array<i32>} : memref<1x16x16xf32, #tpu.memory_space<vmem>>, vector<1x16x16xf32>,
    return
  }
  func.func @transform_0(%arg0: i32) -> (i32, i32, i32) {
    %c0_i32 = arith.constant 0 : i32
    %c0_i32_0 = arith.constant 0 : i32
    %c0_i32_1 = arith.constant 0 : i32
    return %arg0, %c0_i32, %c0_i32_0 : i32, i32, i32
  }
  func.func @transform_1(%arg0: i32) -> (i32, i32, i32) {
    %c0_i32 = arith.constant 0 : i32
    %c0_i32_0 = arith.constant 0 : i32
    %c0_i32_1 = arith.constant 0 : i32
    %c0_i32_2 = arith.constant 0 : i32
    return %c0_i32, %c0_i32_0, %c0_i32_1 : i32, i32, i32
  }
  func.func @transform_2(%arg0: i32) -> (i32, i32) {
    %c0_i32 = arith.constant 0 : i32
    %c0_i32_0 = arith.constant 0 : i32
    %c0_i32_1 = arith.constant 0 : i32
    return %c0_i32, %c0_i32_0 : i32, i32
  }
  func.func @transform_3(%arg0: i32) -> (i32, i32) {
    %c0_i32 = arith.constant 0 : i32
    %c0_i32_0 = arith.constant 0 : i32
    %c0_i32_1 = arith.constant 0 : i32
    return %c0_i32, %c0_i32_0 : i32, i32
  }
  func.func @transform_4(%arg0: i32) -> (i32, i32) {
    %c0_i32 = arith.constant 0 : i32
    %c0_i32_0 = arith.constant 0 : i32
    %c0_i32_1 = arith.constant 0 : i32
    return %c0_i32, %c0_i32_0 : i32, i32
  }
  func.func @transform_5(%arg0: i32) -> (i32, i32) {
    %c0_i32 = arith.constant 0 : i32
    %c0_i32_0 = arith.constant 0 : i32
    %c0_i32_1 = arith.constant 0 : i32
    return %c0_i32, %c0_i32_0 : i32, i32
  }
  func.func @transform_6(%arg0: i32) -> (i32, i32) {
    %c0_i32 = arith.constant 0 : i32
    %c0_i32_0 = arith.constant 0 : i32
    %c0_i32_1 = arith.constant 0 : i32
    return %c0_i32, %c0_i32_0 : i32, i32
  }
  func.func @transform_7(%arg0: i32) -> (i32, i32, i32) {
    %c0_i32 = arith.constant 0 : i32
    %c0_i32_0 = arith.constant 0 : i32
    %c0_i32_1 = arith.constant 0 : i32
    return %arg0, %c0_i32, %c0_i32_0 : i32, i32, i32
  }
}

</mosaic_0001>

<llo_original>
// kernel: alignment_encoder_forward.4
$region0: #{alignment_encoder_forward.4}
  #allocation0 [shape = 'u32[]', space=smem, size = 0x4, offset = 0x4, fixed_abs, tag = 'smem constant byte address 0x4 - core index']
  #allocation1 [shape = 'u32[72,128]{1,0:T(1,128)}', space=vmem, size = 0x9000, scoped, tag = 'internal scratch']
  %s0 = inlined_call_operand.vmem [shape: f32[2,18,16], index: 0, kind: input, shape index: {}]
  %s1 = inlined_call_operand.vmem [shape: f32[3,16,32], index: 1, kind: input, shape index: {}]
  %s2 = inlined_call_operand.vmem [shape: f32[1,32], index: 2, kind: input, shape index: {}]
  %s3 = inlined_call_operand.vmem [shape: f32[32,16], index: 3, kind: input, shape index: {}]
  %s4 = inlined_call_operand.vmem [shape: f32[1,16], index: 4, kind: input, shape index: {}]
  %s5 = inlined_call_operand.vmem [shape: f32[16,16], index: 5, kind: input, shape index: {}]
  %s6 = inlined_call_operand.vmem [shape: f32[1,16], index: 6, kind: input, shape index: {}]
  %s7 = inlined_call_operand.vmem [shape: f32[2,16,16], index: 7, kind: output, shape index: {}]
  %s8 = sld [smem:[#allocation0]]
  $region61: #{alignment_encoder_forward.4} parent=0
    _
  %s10 = ssub.s32 1, %s8
  %s11 = scalar_select 0, %s10, %s8
  loop: start=0, step=1, limit=4
  $region2: #{alignment_encoder_forward.4} parent=0 // loop_pre_header
    _
  $region3: #{alignment_encoder_forward.4} parent=0 // loop_header
    %s13 = sphi 0, %s17
    %p14 = scmp.ge.s32.totalorder %s13, 4
    %s23 = sphi 0, %s25
    %s26 = sphi 0, %s23
    %s27 = sphi 0, %s26
    %s43 = sphi 0, %s27
    %s47 = sphi 0, %s47
    %s49 = sphi 0, %s47
    %s50 = sphi 0, %s49
    %s64 = sphi 0, %s50
    %s68 = sphi 0, %s68
    %s70 = sphi 0, %s68
    %s71 = sphi 0, %s70
    %s85 = sphi 0, %s71
    %s89 = sphi 0, %s89
    %s91 = sphi 0, %s89
    %s92 = sphi 0, %s91
    %s106 = sphi 0, %s92
    %s110 = sphi 0, %s110
    %s112 = sphi 0, %s110
    %s113 = sphi 0, %s112
    %s127 = sphi 0, %s113
    %s131 = sphi 0, %s131
    %s133 = sphi 0, %s131
    %s134 = sphi 0, %s133
    %s148 = sphi 0, %s134
    %s152 = sphi 0, %s152
    %s154 = sphi 0, %s152
    %s155 = sphi 0, %s154
    %s169 = sphi 0, %s155
    %s175 = sphi 0, %s177
    %s178 = sphi 0, %s175
    %s179 = sphi 0, %s178
    %s195 = sphi 0, %s179
  $region4: #{alignment_encoder_forward.4} parent=0 // loop_header_branch
    %16 = sbr.rel (%p14) target = $region8
  $region5: #{alignment_encoder_forward.4} parent=0 // loop_body
    %s18 = ssub.s32 %s13, 1
    %s19 = ssub.s32 %s13, 2
    %s20 = sadd.s32 %s13, 1
    %s21 = ssub.s32 %s13, %s20
    %p22 = scmp.eq.s32.totalorder %s21, 0
    %s24 = sadd.s32 %s23, 1
    %s25 = scalar_select %p22, %s23, %s24
    %p28 = pneg %p22
    %p29 = scmp.eq.s32.totalorder %s13, 1
    %p30 = por %p28, %p29
    %p31 = scmp.ne.s32.totalorder %s23, %s26
    %p32 = scmp.eq.s32.totalorder %s13, 0
    %p33 = por %p31, %p32
    %p34 = scmp.ne.s32.totalorder %s23, %s26
    %p35 = scmp.eq.s32.totalorder %s18, 1
    %p36 = por %p34, %p35
    %p37 = scmp.ne.s32.totalorder %s26, %s27
    %p38 = scmp.eq.s32.totalorder %s18, 0
    %p39 = por %p37, %p38
    %p40 = scmp.ne.s32.totalorder %s26, %s27
    %p41 = scmp.eq.s32.totalorder %s19, 1
    %p42 = por %p40, %p41
    %p44 = scmp.ne.s32.totalorder %s27, %s43
    %p45 = scmp.eq.s32.totalorder %s19, 0
    %p46 = por %p44, %p45
    %s48 = sadd.s32 %s47, 1
    %p51 = scmp.eq.s32.totalorder %s13, 1
    %p52 = scmp.ne.s32.totalorder %s47, %s49
    %p53 = scmp.eq.s32.totalorder %s13, 0
    %p54 = por %p52, %p53
    %p55 = scmp.ne.s32.totalorder %s47, %s49
    %p56 = scmp.eq.s32.totalorder %s18, 1
    %p57 = por %p55, %p56
    %p58 = scmp.ne.s32.totalorder %s49, %s50
    %p59 = scmp.eq.s32.totalorder %s18, 0
    %p60 = por %p58, %p59
    %p61 = scmp.ne.s32.totalorder %s49, %s50
    %p62 = scmp.eq.s32.totalorder %s19, 1
    %p63 = por %p61, %p62
    %p65 = scmp.ne.s32.totalorder %s50, %s64
    %p66 = scmp.eq.s32.totalorder %s19, 0
    %p67 = por %p65, %p66
    %s69 = sadd.s32 %s68, 1
    %p72 = scmp.eq.s32.totalorder %s13, 1
    %p73 = scmp.ne.s32.totalorder %s68, %s70
    %p74 = scmp.eq.s32.totalorder %s13, 0
    %p75 = por %p73, %p74
    %p76 = scmp.ne.s32.totalorder %s68, %s70
    %p77 = scmp.eq.s32.totalorder %s18, 1
    %p78 = por %p76, %p77
    %p79 = scmp.ne.s32.totalorder %s70, %s71
    %p80 = scmp.eq.s32.totalorder %s18, 0
    %p81 = por %p79, %p80
    %p82 = scmp.ne.s32.totalorder %s70, %s71
    %p83 = scmp.eq.s32.totalorder %s19, 1
    %p84 = por %p82, %p83
    %p86 = scmp.ne.s32.totalorder %s71, %s85
    %p87 = scmp.eq.s32.totalorder %s19, 0
    %p88 = por %p86, %p87
    %s90 = sadd.s32 %s89, 1
    %p93 = scmp.eq.s32.totalorder %s13, 1
    %p94 = scmp.ne.s32.totalorder %s89, %s91
    %p95 = scmp.eq.s32.totalorder %s13, 0
    %p96 = por %p94, %p95
    %p97 = scmp.ne.s32.totalorder %s89, %s91
    %p98 = scmp.eq.s32.totalorder %s18, 1
    %p99 = por %p97, %p98
    %p100 = scmp.ne.s32.totalorder %s91, %s92
    %p101 = scmp.eq.s32.totalorder %s18, 0
    %p102 = por %p100, %p101
    %p103 = scmp.ne.s32.totalorder %s91, %s92
    %p104 = scmp.eq.s32.totalorder %s19, 1
    %p105 = por %p103, %p104
    %p107 = scmp.ne.s32.totalorder %s92, %s106
    %p108 = scmp.eq.s32.totalorder %s19, 0
    %p109 = por %p107, %p108
    %s111 = sadd.s32 %s110, 1
    %p114 = scmp.eq.s32.totalorder %s13, 1
    %p115 = scmp.ne.s32.totalorder %s110, %s112
    %p116 = scmp.eq.s32.totalorder %s13, 0
    %p117 = por %p115, %p116
    %p118 = scmp.ne.s32.totalorder %s110, %s112
    %p119 = scmp.eq.s32.totalorder %s18, 1
    %p120 = por %p118, %p119
    %p121 = scmp.ne.s32.totalorder %s112, %s113
    %p122 = scmp.eq.s32.totalorder %s18, 0
    %p123 = por %p121, %p122
    %p124 = scmp.ne.s32.totalorder %s112, %s113
    %p125 = scmp.eq.s32.totalorder %s19, 1
    %p126 = por %p124, %p125
    %p128 = scmp.ne.s32.totalorder %s113, %s127
    %p129 = scmp.eq.s32.totalorder %s19, 0
    %p130 = por %p128, %p129
    %s132 = sadd.s32 %s131, 1
    %p135 = scmp.eq.s32.totalorder %s13, 1
    %p136 = scmp.ne.s32.totalorder %s131, %s133
    %p137 = scmp.eq.s32.totalorder %s13, 0
    %p138 = por %p136, %p137
    %p139 = scmp.ne.s32.totalorder %s131, %s133
    %p140 = scmp.eq.s32.totalorder %s18, 1
    %p141 = por %p139, %p140
    %p142 = scmp.ne.s32.totalorder %s133, %s134
    %p143 = scmp.eq.s32.totalorder %s18, 0
    %p144 = por %p142, %p143
    %p145 = scmp.ne.s32.totalorder %s133, %s134
    %p146 = scmp.eq.s32.totalorder %s19, 1
    %p147 = por %p145, %p146
    %p149 = scmp.ne.s32.totalorder %s134, %s148
    %p150 = scmp.eq.s32.totalorder %s19, 0
    %p151 = por %p149, %p150
    %s153 = sadd.s32 %s152, 1
    %p156 = scmp.eq.s32.totalorder %s13, 1
    %p157 = scmp.ne.s32.totalorder %s152, %s154
    %p158 = scmp.eq.s32.totalorder %s13, 0
    %p159 = por %p157, %p158
    %p160 = scmp.ne.s32.totalorder %s152, %s154
    %p161 = scmp.eq.s32.totalorder %s18, 1
    %p162 = por %p160, %p161
    %p163 = scmp.ne.s32.totalorder %s154, %s155
    %p164 = scmp.eq.s32.totalorder %s18, 0
    %p165 = por %p163, %p164
    %p166 = scmp.ne.s32.totalorder %s154, %s155
    %p167 = scmp.eq.s32.totalorder %s19, 1
    %p168 = por %p166, %p167
    %p170 = scmp.ne.s32.totalorder %s155, %s169
    %p171 = scmp.eq.s32.totalorder %s19, 0
    %p172 = por %p170, %p171
    %s173 = ssub.s32 %s13, %s20
    %p174 = scmp.eq.s32.totalorder %s173, 0
    %s176 = sadd.s32 %s175, 1
    %s177 = scalar_select %p174, %s175, %s176
    %p180 = pneg %p174
    %p181 = scmp.eq.s32.totalorder %s13, 1
    %p182 = por %p180, %p181
    %p183 = scmp.ne.s32.totalorder %s175, %s178
    %p184 = scmp.eq.s32.totalorder %s13, 0
    %p185 = por %p183, %p184
    %p186 = scmp.ne.s32.totalorder %s175, %s178
    %p187 = scmp.eq.s32.totalorder %s18, 1
    %p188 = por %p186, %p187
    %p189 = scmp.ne.s32.totalorder %s178, %s179
    %p190 = scmp.eq.s32.totalorder %s18, 0
    %p191 = por %p189, %p190
    %p192 = scmp.ne.s32.totalorder %s178, %s179
    %p193 = scmp.eq.s32.totalorder %s19, 1
    %p194 = por %p192, %p193
    %p196 = scmp.ne.s32.totalorder %s179, %s195
    %p197 = scmp.eq.s32.totalorder %s19, 0
    %p198 = por %p196, %p197
    %p199 = scmp.le.s32.totalorder 1, %s13
    %p200 = scmp.lt.s32.totalorder %s13, 3
    %p201 = pnand %p199, %p200
    %p202 = pneg %p201
    // Predicated region
    $region9: #{alignment_encoder_forward.4} parent=5 // pred_check
      _
    $region10: #{alignment_encoder_forward.4} parent=5 // pred_check_branch
      %204 = sbr.rel (%p201) target = $region12
    $region11: #{alignment_encoder_forward.4} parent=5 // pred_region
      %s205 = ssub.s32 %s13, 1
      // Predicated region
      $region13: #{alignment_encoder_forward.4} parent=11 // pred_check
        %p206 = pneg %p60
      $region14: #{alignment_encoder_forward.4} parent=11 // pred_check_branch
        %208 = sbr.rel (%p206) target = $region16
      $region15: #{alignment_encoder_forward.4} parent=11 // pred_region
        _
      $region16: #{alignment_encoder_forward.4} parent=11 // pred_fallthru
        _
      // Predicated region
      $region17: #{alignment_encoder_forward.4} parent=11 // pred_check
        %p209 = pneg %p81
      $region18: #{alignment_encoder_forward.4} parent=11 // pred_check_branch
        %211 = sbr.rel (%p209) target = $region20
      $region19: #{alignment_encoder_forward.4} parent=11 // pred_region
        _
      $region20: #{alignment_encoder_forward.4} parent=11 // pred_fallthru
        _
      // Predicated region
      $region21: #{alignment_encoder_forward.4} parent=11 // pred_check
        %p212 = pneg %p102
      $region22: #{alignment_encoder_forward.4} parent=11 // pred_check_branch
        %214 = sbr.rel (%p212) target = $region24
      $region23: #{alignment_encoder_forward.4} parent=11 // pred_region
        _
      $region24: #{alignment_encoder_forward.4} parent=11 // pred_fallthru
        _
      // Predicated region
      $region25: #{alignment_encoder_forward.4} parent=11 // pred_check
        %p215 = pneg %p123
      $region26: #{alignment_encoder_forward.4} parent=11 // pred_check_branch
        %217 = sbr.rel (%p215) target = $region28
      $region27: #{alignment_encoder_forward.4} parent=11 // pred_region
        _
      $region28: #{alignment_encoder_forward.4} parent=11 // pred_fallthru
        _
      // Predicated region
      $region29: #{alignment_encoder_forward.4} parent=11 // pred_check
        %p218 = pneg %p144
      $region30: #{alignment_encoder_forward.4} parent=11 // pred_check_branch
        %220 = sbr.rel (%p218) target = $region32
      $region31: #{alignment_encoder_forward.4} parent=11 // pred_region
        _
      $region32: #{alignment_encoder_forward.4} parent=11 // pred_fallthru
        _
      // Predicated region
      $region33: #{alignment_encoder_forward.4} parent=11 // pred_check
        %p221 = pneg %p165
      $region34: #{alignment_encoder_forward.4} parent=11 // pred_check_branch
        %223 = sbr.rel (%p221) target = $region36
      $region35: #{alignment_encoder_forward.4} parent=11 // pred_region
        _
      $region36: #{alignment_encoder_forward.4} parent=11 // pred_fallthru
        _
    $region12: #{alignment_encoder_forward.4} parent=5 // pred_fallthru
      _
    %p224 = scmp.lt.s32.totalorder %s13, 2
    // Predicated region
    $region37: #{alignment_encoder_forward.4} parent=5 // pred_check
      %p225 = pneg %p224
    $region38: #{alignment_encoder_forward.4} parent=5 // pred_check_branch
      %227 = sbr.rel (%p225) target = $region40
    $region39: #{alignment_encoder_forward.4} parent=5 // pred_region
      // Predicated region
      $region41: #{alignment_encoder_forward.4} parent=39 // pred_check
        %p228 = pneg %p33
      $region42: #{alignment_encoder_forward.4} parent=39 // pred_check_branch
        %230 = sbr.rel (%p228) target = $region44
      $region43: #{alignment_encoder_forward.4} parent=39 // pred_region
        %p231 = scmp.lt.s32.totalorder %s13, 1
        %s232 = scalar_select %p231, %s13, 1
        %s233 = smul.addr %s232, 3
        %s234 = smul.addr %s233, 8
        %s235 = scalar_lea.vmem %s0, %s234
      $region44: #{alignment_encoder_forward.4} parent=39 // pred_fallthru
        _
    $region40: #{alignment_encoder_forward.4} parent=5 // pred_fallthru
      _
    %p236 = scmp.le.s32.totalorder 1, %s13
    %p237 = scmp.lt.s32.totalorder %s13, 3
    %p238 = pnand %p236, %p237
    %p239 = pneg %p238
    // Predicated region
    $region45: #{alignment_encoder_forward.4} parent=5 // pred_check
      _
    $region46: #{alignment_encoder_forward.4} parent=5 // pred_check_branch
      %241 = sbr.rel (%p238) target = $region48
    $region47: #{alignment_encoder_forward.4} parent=5 // pred_region
      %s242 = ssub.s32 %s13, 1
      %p243 = scmp.lt.s32.totalorder %s18, 1
      %s244 = scalar_select %p243, %s18, 1
      %s245 = smul.addr %s244, 3
      %s246 = smul.addr %s245, 8
      %s247 = scalar_lea.vmem %s0, %s246
      %p248 = pneg %p39
      %p249 = pneg %p36
      %p250 = pneg %p60
      %p251 = pneg %p57
      %p252 = pneg %p81
      %p253 = pneg %p78
      %p254 = pneg %p102
      %p255 = pneg %p99
      %p256 = pneg %p123
      %p257 = pneg %p120
      %p258 = pneg %p144
      %p259 = pneg %p141
      %p260 = pneg %p165
      %p261 = pneg %p162
      %p262 = pneg %p191
      %p263 = pneg %p188
      %p264 = scmp.lt.s32.totalorder %s18, 1
      %s265 = scalar_select %p264, %s18, 1
      %s266 = smul.addr %s265, 2
      %s267 = smul.addr %s266, 8
      %s268 = scalar_lea.vmem %s7, %s267
      %p269 = scmp.lt.s32.totalorder %s18, 1
      %s270 = scalar_select %p269, %s18, 1
      %s271 = smul.addr %s270, 3
      %s272 = smul.addr %s271, 8
      %s273 = scalar_lea.vmem %s0, %s272
      %p274 = scmp.lt.s32.totalorder %s18, 1
      %s275 = scalar_select %p274, %s18, 1
      %s276 = smul.addr %s275, 2
      %s277 = smul.addr %s276, 8
      %s278 = scalar_lea.vmem %s7, %s277
      %v279 = vld [vmem:[%s273] sm:$0xff]
      %v280 = vld [vmem:[%s273 + $0x8] sm:$0xff]
      %v281 = vld [vmem:[%s273 + $0x10] sm:$0x3]
      %v282 = vld [vmem:[%s1] sm:$0xff]
      %v283 = vld [vmem:[%s1 + $0x8] sm:$0xff]
      %s284 = scalar_lea.vmem %s1, 16
      %v285 = vld [vmem:[%s284] sm:$0xff]
      %v286 = vld [vmem:[%s284 + $0x8] sm:$0xff]
      %vm290 = vcmask 1046528
      %v291 = vrot.slane %v279, 1
      %v292 = vrot.slane %v280, 1
      %v293 = vsel %vm290, %v291, %v292
      %v294 = vrot.slane %v281, 1
      %v295 = vsel %vm290, %v292, %v294
      %vm296 = vcmask 130048
      %v297 = vsel %vm296, %v293, 0
      %v299 = vsel %vm296, %v295, 0
      %301 = vmatpush.msra.mxu0 0.0
      %302 = vmatpush.msra.mxu0 0.0
      %303 = vmatpush.msra.mxu0 0.0
      %304 = vmatpush.msra.mxu0 0.0
      %305 = vmatpush.msra.mxu0 0.0
      %306 = vmatpush.msra.mxu0 0.0
      %307 = vmatpush.msra.mxu0 0.0
      %308 = vmatpush.msra.mxu0 0.0
      %309 = vmatpush.msra.mxu0 0.0
      %310 = vmatpush.msra.mxu0 0.0
      %311 = vmatpush.msra.mxu0 0.0
      %312 = vmatpush.msra.mxu0 0.0
      %313 = vmatpush.msra.mxu0 0.0
      %314 = vmatpush.msra.mxu0 0.0
      %315 = vmatpush.msra.mxu0 %v286
      %316 = vmatpush.msra.mxu0 %v285
      %317 = vmatmul.f32.gmra.mxu0 %v297
      %v318 = vpop.f32.mrf.mxu0
      %v319 = vadd.f32 0.0, %v318
      %320 = vmatmul.f32.gmra.mxu0 %v299
      %v321 = vpop.f32.mrf.mxu0
      %v322 = vadd.f32 0.0, %v321
      %323 = vdwg.mxu0
      %v324 = vsel %vm296, %v279, 0
      %v326 = vsel %vm296, %v280, 0
      %328 = vmatpush.msra.mxu0 0.0
      %329 = vmatpush.msra.mxu0 0.0
      %330 = vmatpush.msra.mxu0 0.0
      %331 = vmatpush.msra.mxu0 0.0
      %332 = vmatpush.msra.mxu0 0.0
      %333 = vmatpush.msra.mxu0 0.0
      %334 = vmatpush.msra.mxu0 0.0
      %335 = vmatpush.msra.mxu0 0.0
      %336 = vmatpush.msra.mxu0 0.0
      %337 = vmatpush.msra.mxu0 0.0
      %338 = vmatpush.msra.mxu0 0.0
      %339 = vmatpush.msra.mxu0 0.0
      %340 = vmatpush.msra.mxu0 0.0
      %341 = vmatpush.msra.mxu0 0.0
      %342 = vmatpush.msra.mxu0 %v283
      %343 = vmatpush.msra.mxu0 %v282
      %344 = vmatmul.f32.gmra.mxu0 %v324
      %v345 = vpop.f32.mrf.mxu0
      %v346 = vadd.f32 %v319, %v345
      %347 = vmatmul.f32.gmra.mxu0 %v326
      %v348 = vpop.f32.mrf.mxu0
      %v349 = vadd.f32 %v322, %v348
      %350 = vdwg.mxu0
      %s351 = scalar_lea.vmem %s1, 32
      %v352 = vld [vmem:[%s351] sm:$0xff]
      %v353 = vld [vmem:[%s351 + $0x8] sm:$0xff]
      %vm354 = vcmask 1045504
      %v355 = vrot.slane %v279, 2
      %v356 = vrot.slane %v280, 2
      %v357 = vsel %vm354, %v355, %v356
      %v358 = vrot.slane %v281, 2
      %v359 = vsel %vm354, %v356, %v358
      %v360 = vsel %vm296, %v357, 0
      %v362 = vsel %vm296, %v359, 0
      %364 = vmatpush.msra.mxu0 0.0
      %365 = vmatpush.msra.mxu0 0.0
      %366 = vmatpush.msra.mxu0 0.0
      %367 = vmatpush.msra.mxu0 0.0
      %368 = vmatpush.msra.mxu0 0.0
      %369 = vmatpush.msra.mxu0 0.0
      %370 = vmatpush.msra.mxu0 0.0
      %371 = vmatpush.msra.mxu0 0.0
      %372 = vmatpush.msra.mxu0 0.0
      %373 = vmatpush.msra.mxu0 0.0
      %374 = vmatpush.msra.mxu0 0.0
      %375 = vmatpush.msra.mxu0 0.0
      %376 = vmatpush.msra.mxu0 0.0
      %377 = vmatpush.msra.mxu0 0.0
      %378 = vmatpush.msra.mxu0 %v353
      %379 = vmatpush.msra.mxu0 %v352
      %380 = vmatmul.f32.gmra.mxu0 %v360
      %v381 = vpop.f32.mrf.mxu0
      %v382 = vadd.f32 0.0, %v381
      %383 = vmatmul.f32.gmra.mxu0 %v362
      %v384 = vpop.f32.mrf.mxu0
      %v385 = vadd.f32 0.0, %v384
      %386 = vdwg.mxu0
      %v387 = vadd.f32 %v346, %v382
      %v388 = vadd.f32 %v349, %v385
      %v389 = vld [vmem:[%s2] sm:$0x1]
      %v391 = vperm.slane %v389, 0
      %v393 = vadd.f32 %v387, %v391
      %v394 = vadd.f32 %v388, %v391
      %v395 = vmax.f32 %v393, 0.0
      %v396 = vmax.f32 %v394, 0.0
      %v397 = vld [vmem:[%s3] sm:$0xff]
      %v398 = vld [vmem:[%s3 + $0x8] sm:$0xff]
      %v399 = vld [vmem:[%s3 + $0x10] sm:$0xff]
      %v400 = vld [vmem:[%s3 + $0x18] sm:$0xff]
      %v401 = vld [vmem:[%s4] sm:$0x1]
      %v403 = vperm.slane %v401, 0
      %vm405 = vcmask 261120
      %v407 = vsel %vm405, %v395, 0
      %v410 = vsel %vm405, %v396, 0
      %412 = vmatpush.msra.mxu0 0.0
      %413 = vmatpush.msra.mxu0 0.0
      %414 = vmatpush.msra.mxu0 0.0
      %415 = vmatpush.msra.mxu0 0.0
      %416 = vmatpush.msra.mxu0 0.0
      %417 = vmatpush.msra.mxu0 0.0
      %418 = vmatpush.msra.mxu0 0.0
      %419 = vmatpush.msra.mxu0 0.0
      %420 = vmatpush.msra.mxu0 0.0
      %421 = vmatpush.msra.mxu0 0.0
      %422 = vmatpush.msra.mxu0 0.0
      %423 = vmatpush.msra.mxu0 0.0
      %424 = vmatpush.msra.mxu0 %v400
      %425 = vmatpush.msra.mxu0 %v399
      %426 = vmatpush.msra.mxu0 %v398
      %427 = vmatpush.msra.mxu0 %v397
      %428 = vmatmul.f32.gmra.mxu0 %v407
      %v429 = vpop.f32.mrf.mxu0
      %v430 = vadd.f32 %v403, %v429
      %431 = vmatmul.f32.gmra.mxu0 %v410
      %v432 = vpop.f32.mrf.mxu0
      %v433 = vadd.f32 %v403, %v432
      %434 = vdwg.mxu0
      %v435 = vmax.f32 %v430, 0.0
      %v436 = vmax.f32 %v433, 0.0
      %v437 = vld [vmem:[%s5] sm:$0xff]
      %v438 = vld [vmem:[%s5 + $0x8] sm:$0xff]
      %v439 = vld [vmem:[%s6] sm:$0x1]
      %v441 = vperm.slane %v439, 0
      %v444 = vsel %vm296, %v435, 0
      %v447 = vsel %vm296, %v436, 0
      %449 = vmatpush.msra.mxu0 0.0
      %450 = vmatpush.msra.mxu0 0.0
      %451 = vmatpush.msra.mxu0 0.0
      %452 = vmatpush.msra.mxu0 0.0
      %453 = vmatpush.msra.mxu0 0.0
      %454 = vmatpush.msra.mxu0 0.0
      %455 = vmatpush.msra.mxu0 0.0
      %456 = vmatpush.msra.mxu0 0.0
      %457 = vmatpush.msra.mxu0 0.0
      %458 = vmatpush.msra.mxu0 0.0
      %459 = vmatpush.msra.mxu0 0.0
      %460 = vmatpush.msra.mxu0 0.0
      %461 = vmatpush.msra.mxu0 0.0
      %462 = vmatpush.msra.mxu0 0.0
      %463 = vmatpush.msra.mxu0 %v438
      %464 = vmatpush.msra.mxu0 %v437
      %465 = vmatmul.f32.gmra.mxu0 %v444
      %v466 = vpop.f32.mrf.mxu0
      %v467 = vadd.f32 %v441, %v466
      %468 = vmatmul.f32.gmra.mxu0 %v447
      %v469 = vpop.f32.mrf.mxu0
      %v470 = vadd.f32 %v441, %v469
      %471 = vdwg.mxu0
      %472 = vst.msk [vmem:[%s278] sm:$0xff] %vm296, %v467
      %473 = vst.msk [vmem:[%s278 + $0x8] sm:$0xff] %vm296, %v470
      %p474 = scmp.lt.s32.totalorder %s18, 1
      %s475 = scalar_select %p474, %s18, 1
      %s476 = smul.addr %s475, 2
      %s477 = smul.addr %s476, 8
      %s478 = scalar_lea.vmem %s7, %s477
      // Predicated region
      $region49: #{alignment_encoder_forward.4} parent=47 // pred_check
        %p479 = pneg %p188
      $region50: #{alignment_encoder_forward.4} parent=47 // pred_check_branch
        %481 = sbr.rel (%p479) target = $region52
      $region51: #{alignment_encoder_forward.4} parent=47 // pred_region
        _
      $region52: #{alignment_encoder_forward.4} parent=47 // pred_fallthru
        _
    $region48: #{alignment_encoder_forward.4} parent=5 // pred_fallthru
      _
    %p482 = scmp.le.s32.totalorder 2, %s13
    // Predicated region
    $region53: #{alignment_encoder_forward.4} parent=5 // pred_check
      %p483 = pneg %p482
    $region54: #{alignment_encoder_forward.4} parent=5 // pred_check_branch
      %485 = sbr.rel (%p483) target = $region56
    $region55: #{alignment_encoder_forward.4} parent=5 // pred_region
      %s486 = ssub.s32 %s13, 2
      // Predicated region
      $region57: #{alignment_encoder_forward.4} parent=55 // pred_check
        %p487 = pneg %p194
      $region58: #{alignment_encoder_forward.4} parent=55 // pred_check_branch
        %489 = sbr.rel (%p487) target = $region60
      $region59: #{alignment_encoder_forward.4} parent=55 // pred_region
        %p490 = scmp.lt.s32.totalorder %s19, 1
        %s491 = scalar_select %p490, %s19, 1
        %s492 = smul.addr %s491, 2
        %s493 = smul.addr %s492, 8
        %s494 = scalar_lea.vmem %s7, %s493
      $region60: #{alignment_encoder_forward.4} parent=55 // pred_fallthru
        _
    $region56: #{alignment_encoder_forward.4} parent=5 // pred_fallthru
      _
  $region6: #{alignment_encoder_forward.4} parent=0 // loop_footer
    %s17 = sadd.s32 1, %s13
  $region7: #{alignment_encoder_forward.4} parent=0 // loop_footer_branch
    %12 = sbr.rel target = $region3
  $region8: #{alignment_encoder_forward.4} parent=0 // loop_exit
    _

// kernel: alignment_encoder_forward.3
$region0: #{alignment_encoder_forward.3}
  #allocation0 [shape = 'u32[]', space=smem, size = 0x4, offset = 0x4, fixed_abs, tag = 'smem constant byte address 0x4 - core index']
  #allocation1 [shape = 'u32[72,128]{1,0:T(1,128)}', space=vmem, size = 0x9000, scoped, tag = 'internal scratch']
  %s0 = inlined_call_operand.vmem [shape: f32[2,10,32], index: 0, kind: input, shape index: {}]
  %s1 = inlined_call_operand.vmem [shape: f32[3,32,64], index: 1, kind: input, shape index: {}]
  %s2 = inlined_call_operand.vmem [shape: f32[1,64], index: 2, kind: input, shape index: {}]
  %s3 = inlined_call_operand.vmem [shape: f32[64,16], index: 3, kind: input, shape index: {}]
  %s4 = inlined_call_operand.vmem [shape: f32[1,16], index: 4, kind: input, shape index: {}]
  %s5 = inlined_call_operand.vmem [shape: f32[2,8,16], index: 5, kind: output, shape index: {}]
  %s6 = sld [smem:[#allocation0]]
  $region53: #{alignment_encoder_forward.3} parent=0
    _
  %s8 = ssub.s32 1, %s6
  %s9 = scalar_select 0, %s8, %s6
  loop: start=0, step=1, limit=4
  $region2: #{alignment_encoder_forward.3} parent=0 // loop_pre_header
    _
  $region3: #{alignment_encoder_forward.3} parent=0 // loop_header
    %s11 = sphi 0, %s15
    %p12 = scmp.ge.s32.totalorder %s11, 4
    %s21 = sphi 0, %s23
    %s24 = sphi 0, %s21
    %s25 = sphi 0, %s24
    %s41 = sphi 0, %s25
    %s45 = sphi 0, %s45
    %s47 = sphi 0, %s45
    %s48 = sphi 0, %s47
    %s62 = sphi 0, %s48
    %s66 = sphi 0, %s66
    %s68 = sphi 0, %s66
    %s69 = sphi 0, %s68
    %s83 = sphi 0, %s69
    %s87 = sphi 0, %s87
    %s89 = sphi 0, %s87
    %s90 = sphi 0, %s89
    %s104 = sphi 0, %s90
    %s108 = sphi 0, %s108
    %s110 = sphi 0, %s108
    %s111 = sphi 0, %s110
    %s125 = sphi 0, %s111
    %s131 = sphi 0, %s133
    %s134 = sphi 0, %s131
    %s135 = sphi 0, %s134
    %s151 = sphi 0, %s135
  $region4: #{alignment_encoder_forward.3} parent=0 // loop_header_branch
    %14 = sbr.rel (%p12) target = $region8
  $region5: #{alignment_encoder_forward.3} parent=0 // loop_body
    %s16 = ssub.s32 %s11, 1
    %s17 = ssub.s32 %s11, 2
    %s18 = sadd.s32 %s11, 1
    %s19 = ssub.s32 %s11, %s18
    %p20 = scmp.eq.s32.totalorder %s19, 0
    %s22 = sadd.s32 %s21, 1
    %s23 = scalar_select %p20, %s21, %s22
    %p26 = pneg %p20
    %p27 = scmp.eq.s32.totalorder %s11, 1
    %p28 = por %p26, %p27
    %p29 = scmp.ne.s32.totalorder %s21, %s24
    %p30 = scmp.eq.s32.totalorder %s11, 0
    %p31 = por %p29, %p30
    %p32 = scmp.ne.s32.totalorder %s21, %s24
    %p33 = scmp.eq.s32.totalorder %s16, 1
    %p34 = por %p32, %p33
    %p35 = scmp.ne.s32.totalorder %s24, %s25
    %p36 = scmp.eq.s32.totalorder %s16, 0
    %p37 = por %p35, %p36
    %p38 = scmp.ne.s32.totalorder %s24, %s25
    %p39 = scmp.eq.s32.totalorder %s17, 1
    %p40 = por %p38, %p39
    %p42 = scmp.ne.s32.totalorder %s25, %s41
    %p43 = scmp.eq.s32.totalorder %s17, 0
    %p44 = por %p42, %p43
    %s46 = sadd.s32 %s45, 1
    %p49 = scmp.eq.s32.totalorder %s11, 1
    %p50 = scmp.ne.s32.totalorder %s45, %s47
    %p51 = scmp.eq.s32.totalorder %s11, 0
    %p52 = por %p50, %p51
    %p53 = scmp.ne.s32.totalorder %s45, %s47
    %p54 = scmp.eq.s32.totalorder %s16, 1
    %p55 = por %p53, %p54
    %p56 = scmp.ne.s32.totalorder %s47, %s48
    %p57 = scmp.eq.s32.totalorder %s16, 0
    %p58 = por %p56, %p57
    %p59 = scmp.ne.s32.totalorder %s47, %s48
    %p60 = scmp.eq.s32.totalorder %s17, 1
    %p61 = por %p59, %p60
    %p63 = scmp.ne.s32.totalorder %s48, %s62
    %p64 = scmp.eq.s32.totalorder %s17, 0
    %p65 = por %p63, %p64
    %s67 = sadd.s32 %s66, 1
    %p70 = scmp.eq.s32.totalorder %s11, 1
    %p71 = scmp.ne.s32.totalorder %s66, %s68
    %p72 = scmp.eq.s32.totalorder %s11, 0
    %p73 = por %p71, %p72
    %p74 = scmp.ne.s32.totalorder %s66, %s68
    %p75 = scmp.eq.s32.totalorder %s16, 1
    %p76 = por %p74, %p75
    %p77 = scmp.ne.s32.totalorder %s68, %s69
    %p78 = scmp.eq.s32.totalorder %s16, 0
    %p79 = por %p77, %p78
    %p80 = scmp.ne.s32.totalorder %s68, %s69
    %p81 = scmp.eq.s32.totalorder %s17, 1
    %p82 = por %p80, %p81
    %p84 = scmp.ne.s32.totalorder %s69, %s83
    %p85 = scmp.eq.s32.totalorder %s17, 0
    %p86 = por %p84, %p85
    %s88 = sadd.s32 %s87, 1
    %p91 = scmp.eq.s32.totalorder %s11, 1
    %p92 = scmp.ne.s32.totalorder %s87, %s89
    %p93 = scmp.eq.s32.totalorder %s11, 0
    %p94 = por %p92, %p93
    %p95 = scmp.ne.s32.totalorder %s87, %s89
    %p96 = scmp.eq.s32.totalorder %s16, 1
    %p97 = por %p95, %p96
    %p98 = scmp.ne.s32.totalorder %s89, %s90
    %p99 = scmp.eq.s32.totalorder %s16, 0
    %p100 = por %p98, %p99
    %p101 = scmp.ne.s32.totalorder %s89, %s90
    %p102 = scmp.eq.s32.totalorder %s17, 1
    %p103 = por %p101, %p102
    %p105 = scmp.ne.s32.totalorder %s90, %s104
    %p106 = scmp.eq.s32.totalorder %s17, 0
    %p107 = por %p105, %p106
    %s109 = sadd.s32 %s108, 1
    %p112 = scmp.eq.s32.totalorder %s11, 1
    %p113 = scmp.ne.s32.totalorder %s108, %s110
    %p114 = scmp.eq.s32.totalorder %s11, 0
    %p115 = por %p113, %p114
    %p116 = scmp.ne.s32.totalorder %s108, %s110
    %p117 = scmp.eq.s32.totalorder %s16, 1
    %p118 = por %p116, %p117
    %p119 = scmp.ne.s32.totalorder %s110, %s111
    %p120 = scmp.eq.s32.totalorder %s16, 0
    %p121 = por %p119, %p120
    %p122 = scmp.ne.s32.totalorder %s110, %s111
    %p123 = scmp.eq.s32.totalorder %s17, 1
    %p124 = por %p122, %p123
    %p126 = scmp.ne.s32.totalorder %s111, %s125
    %p127 = scmp.eq.s32.totalorder %s17, 0
    %p128 = por %p126, %p127
    %s129 = ssub.s32 %s11, %s18
    %p130 = scmp.eq.s32.totalorder %s129, 0
    %s132 = sadd.s32 %s131, 1
    %s133 = scalar_select %p130, %s131, %s132
    %p136 = pneg %p130
    %p137 = scmp.eq.s32.totalorder %s11, 1
    %p138 = por %p136, %p137
    %p139 = scmp.ne.s32.totalorder %s131, %s134
    %p140 = scmp.eq.s32.totalorder %s11, 0
    %p141 = por %p139, %p140
    %p142 = scmp.ne.s32.totalorder %s131, %s134
    %p143 = scmp.eq.s32.totalorder %s16, 1
    %p144 = por %p142, %p143
    %p145 = scmp.ne.s32.totalorder %s134, %s135
    %p146 = scmp.eq.s32.totalorder %s16, 0
    %p147 = por %p145, %p146
    %p148 = scmp.ne.s32.totalorder %s134, %s135
    %p149 = scmp.eq.s32.totalorder %s17, 1
    %p150 = por %p148, %p149
    %p152 = scmp.ne.s32.totalorder %s135, %s151
    %p153 = scmp.eq.s32.totalorder %s17, 0
    %p154 = por %p152, %p153
    %p155 = scmp.le.s32.totalorder 1, %s11
    %p156 = scmp.lt.s32.totalorder %s11, 3
    %p157 = pnand %p155, %p156
    %p158 = pneg %p157
    // Predicated region
    $region9: #{alignment_encoder_forward.3} parent=5 // pred_check
      _
    $region10: #{alignment_encoder_forward.3} parent=5 // pred_check_branch
      %160 = sbr.rel (%p157) target = $region12
    $region11: #{alignment_encoder_forward.3} parent=5 // pred_region
      %s161 = ssub.s32 %s11, 1
      // Predicated region
      $region13: #{alignment_encoder_forward.3} parent=11 // pred_check
        %p162 = pneg %p58
      $region14: #{alignment_encoder_forward.3} parent=11 // pred_check_branch
        %164 = sbr.rel (%p162) target = $region16
      $region15: #{alignment_encoder_forward.3} parent=11 // pred_region
        _
      $region16: #{alignment_encoder_forward.3} parent=11 // pred_fallthru
        _
      // Predicated region
      $region17: #{alignment_encoder_forward.3} parent=11 // pred_check
        %p165 = pneg %p79
      $region18: #{alignment_encoder_forward.3} parent=11 // pred_check_branch
        %167 = sbr.rel (%p165) target = $region20
      $region19: #{alignment_encoder_forward.3} parent=11 // pred_region
        _
      $region20: #{alignment_encoder_forward.3} parent=11 // pred_fallthru
        _
      // Predicated region
      $region21: #{alignment_encoder_forward.3} parent=11 // pred_check
        %p168 = pneg %p100
      $region22: #{alignment_encoder_forward.3} parent=11 // pred_check_branch
        %170 = sbr.rel (%p168) target = $region24
      $region23: #{alignment_encoder_forward.3} parent=11 // pred_region
        _
      $region24: #{alignment_encoder_forward.3} parent=11 // pred_fallthru
        _
      // Predicated region
      $region25: #{alignment_encoder_forward.3} parent=11 // pred_check
        %p171 = pneg %p121
      $region26: #{alignment_encoder_forward.3} parent=11 // pred_check_branch
        %173 = sbr.rel (%p171) target = $region28
      $region27: #{alignment_encoder_forward.3} parent=11 // pred_region
        _
      $region28: #{alignment_encoder_forward.3} parent=11 // pred_fallthru
        _
    $region12: #{alignment_encoder_forward.3} parent=5 // pred_fallthru
      _
    %p174 = scmp.lt.s32.totalorder %s11, 2
    // Predicated region
    $region29: #{alignment_encoder_forward.3} parent=5 // pred_check
      %p175 = pneg %p174
    $region30: #{alignment_encoder_forward.3} parent=5 // pred_check_branch
      %177 = sbr.rel (%p175) target = $region32
    $region31: #{alignment_encoder_forward.3} parent=5 // pred_region
      // Predicated region
      $region33: #{alignment_encoder_forward.3} parent=31 // pred_check
        %p178 = pneg %p31
      $region34: #{alignment_encoder_forward.3} parent=31 // pred_check_branch
        %180 = sbr.rel (%p178) target = $region36
      $region35: #{alignment_encoder_forward.3} parent=31 // pred_region
        %p181 = scmp.lt.s32.totalorder %s11, 1
        %s182 = scalar_select %p181, %s11, 1
        %s183 = smul.addr %s182, 2
        %s184 = smul.addr %s183, 8
        %s185 = scalar_lea.vmem %s0, %s184
      $region36: #{alignment_encoder_forward.3} parent=31 // pred_fallthru
        _
    $region32: #{alignment_encoder_forward.3} parent=5 // pred_fallthru
      _
    %p186 = scmp.le.s32.totalorder 1, %s11
    %p187 = scmp.lt.s32.totalorder %s11, 3
    %p188 = pnand %p186, %p187
    %p189 = pneg %p188
    // Predicated region
    $region37: #{alignment_encoder_forward.3} parent=5 // pred_check
      _
    $region38: #{alignment_encoder_forward.3} parent=5 // pred_check_branch
      %191 = sbr.rel (%p188) target = $region40
    $region39: #{alignment_encoder_forward.3} parent=5 // pred_region
      %s192 = ssub.s32 %s11, 1
      %p193 = scmp.lt.s32.totalorder %s16, 1
      %s194 = scalar_select %p193, %s16, 1
      %s195 = smul.addr %s194, 2
      %s196 = smul.addr %s195, 8
      %s197 = scalar_lea.vmem %s0, %s196
      %p198 = pneg %p37
      %p199 = pneg %p34
      %p200 = pneg %p58
      %p201 = pneg %p55
      %p202 = pneg %p79
      %p203 = pneg %p76
      %p204 = pneg %p100
      %p205 = pneg %p97
      %p206 = pneg %p121
      %p207 = pneg %p118
      %p208 = pneg %p147
      %p209 = pneg %p144
      %p210 = scmp.lt.s32.totalorder %s16, 1
      %s211 = scalar_select %p210, %s16, 1
      %s212 = smul.addr %s211, 8
      %s213 = scalar_lea.vmem %s5, %s212
      %p214 = scmp.lt.s32.totalorder %s16, 1
      %s215 = scalar_select %p214, %s16, 1
      %s216 = smul.addr %s215, 2
      %s217 = smul.addr %s216, 8
      %s218 = scalar_lea.vmem %s0, %s217
      %p219 = scmp.lt.s32.totalorder %s16, 1
      %s220 = scalar_select %p219, %s16, 1
      %s221 = smul.addr %s220, 8
      %s222 = scalar_lea.vmem %s5, %s221
      %v223 = vld [vmem:[%s218] sm:$0xff]
      %v224 = vld [vmem:[%s218 + $0x8] sm:$0x3]
      %v225 = vld [vmem:[%s1] sm:$0xff]
      %v226 = vld [vmem:[%s1 + $0x8] sm:$0xff]
      %v227 = vld [vmem:[%s1 + $0x10] sm:$0xff]
      %v228 = vld [vmem:[%s1 + $0x18] sm:$0xff]
      %s229 = scalar_lea.vmem %s1, 32
      %v230 = vld [vmem:[%s229] sm:$0xff]
      %v231 = vld [vmem:[%s229 + $0x8] sm:$0xff]
      %v232 = vld [vmem:[%s229 + $0x10] sm:$0xff]
      %v233 = vld [vmem:[%s229 + $0x18] sm:$0xff]
      %vm236 = vcmask 1046528
      %v237 = vrot.slane %v223, 1
      %v238 = vrot.slane %v224, 1
      %v239 = vsel %vm236, %v237, %v238
      %vm240 = vcmask 261120
      %v241 = vsel %vm240, %v239, 0
      %243 = vmatpush.msra.mxu0 0.0
      %244 = vmatpush.msra.mxu0 0.0
      %245 = vmatpush.msra.mxu0 0.0
      %246 = vmatpush.msra.mxu0 0.0
      %247 = vmatpush.msra.mxu0 0.0
      %248 = vmatpush.msra.mxu0 0.0
      %249 = vmatpush.msra.mxu0 0.0
      %250 = vmatpush.msra.mxu0 0.0
      %251 = vmatpush.msra.mxu0 0.0
      %252 = vmatpush.msra.mxu0 0.0
      %253 = vmatpush.msra.mxu0 0.0
      %254 = vmatpush.msra.mxu0 0.0
      %255 = vmatpush.msra.mxu0 %v233
      %256 = vmatpush.msra.mxu0 %v232
      %257 = vmatpush.msra.mxu0 %v231
      %258 = vmatpush.msra.mxu0 %v230
      %259 = vmatmul.f32.gmra.mxu0 %v241
      %v260 = vpop.f32.mrf.mxu0
      %v261 = vadd.f32 0.0, %v260
      %262 = vdwg.mxu0
      %v263 = vsel %vm240, %v223, 0
      %265 = vmatpush.msra.mxu0 0.0
      %266 = vmatpush.msra.mxu0 0.0
      %267 = vmatpush.msra.mxu0 0.0
      %268 = vmatpush.msra.mxu0 0.0
      %269 = vmatpush.msra.mxu0 0.0
      %270 = vmatpush.msra.mxu0 0.0
      %271 = vmatpush.msra.mxu0 0.0
      %272 = vmatpush.msra.mxu0 0.0
      %273 = vmatpush.msra.mxu0 0.0
      %274 = vmatpush.msra.mxu0 0.0
      %275 = vmatpush.msra.mxu0 0.0
      %276 = vmatpush.msra.mxu0 0.0
      %277 = vmatpush.msra.mxu0 %v228
      %278 = vmatpush.msra.mxu0 %v227
      %279 = vmatpush.msra.mxu0 %v226
      %280 = vmatpush.msra.mxu0 %v225
      %281 = vmatmul.f32.gmra.mxu0 %v263
      %v282 = vpop.f32.mrf.mxu0
      %v283 = vadd.f32 %v261, %v282
      %284 = vdwg.mxu0
      %s285 = scalar_lea.vmem %s1, 64
      %v286 = vld [vmem:[%s285] sm:$0xff]
      %v287 = vld [vmem:[%s285 + $0x8] sm:$0xff]
      %v288 = vld [vmem:[%s285 + $0x10] sm:$0xff]
      %v289 = vld [vmem:[%s285 + $0x18] sm:$0xff]
      %vm290 = vcmask 1045504
      %v291 = vrot.slane %v223, 2
      %v292 = vrot.slane %v224, 2
      %v293 = vsel %vm290, %v291, %v292
      %v294 = vsel %vm240, %v293, 0
      %296 = vmatpush.msra.mxu0 0.0
      %297 = vmatpush.msra.mxu0 0.0
      %298 = vmatpush.msra.mxu0 0.0
      %299 = vmatpush.msra.mxu0 0.0
      %300 = vmatpush.msra.mxu0 0.0
      %301 = vmatpush.msra.mxu0 0.0
      %302 = vmatpush.msra.mxu0 0.0
      %303 = vmatpush.msra.mxu0 0.0
      %304 = vmatpush.msra.mxu0 0.0
      %305 = vmatpush.msra.mxu0 0.0
      %306 = vmatpush.msra.mxu0 0.0
      %307 = vmatpush.msra.mxu0 0.0
      %308 = vmatpush.msra.mxu0 %v289
      %309 = vmatpush.msra.mxu0 %v288
      %310 = vmatpush.msra.mxu0 %v287
      %311 = vmatpush.msra.mxu0 %v286
      %312 = vmatmul.f32.gmra.mxu0 %v294
      %v313 = vpop.f32.mrf.mxu0
      %v314 = vadd.f32 0.0, %v313
      %315 = vdwg.mxu0
      %v316 = vadd.f32 %v283, %v314
      %v317 = vld [vmem:[%s2] sm:$0x1]
      %v319 = vperm.slane %v317, 0
      %v321 = vadd.f32 %v316, %v319
      %v322 = vmax.f32 %v321, 0.0
      %v323 = vld [vmem:[%s3] sm:$0xff]
      %v324 = vld [vmem:[%s3 + $0x8] sm:$0xff]
      %v325 = vld [vmem:[%s3 + $0x10] sm:$0xff]
      %v326 = vld [vmem:[%s3 + $0x18] sm:$0xff]
      %v327 = vld [vmem:[%s3 + $0x20] sm:$0xff]
      %v328 = vld [vmem:[%s3 + $0x28] sm:$0xff]
      %v329 = vld [vmem:[%s3 + $0x30] sm:$0xff]
      %v330 = vld [vmem:[%s3 + $0x38] sm:$0xff]
      %v331 = vld [vmem:[%s4] sm:$0x1]
      %v333 = vperm.slane %v331, 0
      %vm335 = vcmask 523264
      %v337 = vsel %vm335, %v322, 0
      %339 = vmatpush.msra.mxu0 0.0
      %340 = vmatpush.msra.mxu0 0.0
      %341 = vmatpush.msra.mxu0 0.0
      %342 = vmatpush.msra.mxu0 0.0
      %343 = vmatpush.msra.mxu0 0.0
      %344 = vmatpush.msra.mxu0 0.0
      %345 = vmatpush.msra.mxu0 0.0
      %346 = vmatpush.msra.mxu0 0.0
      %347 = vmatpush.msra.mxu0 %v330
      %348 = vmatpush.msra.mxu0 %v329
      %349 = vmatpush.msra.mxu0 %v328
      %350 = vmatpush.msra.mxu0 %v327
      %351 = vmatpush.msra.mxu0 %v326
      %352 = vmatpush.msra.mxu0 %v325
      %353 = vmatpush.msra.mxu0 %v324
      %354 = vmatpush.msra.mxu0 %v323
      %355 = vmatmul.f32.gmra.mxu0 %v337
      %v356 = vpop.f32.mrf.mxu0
      %v357 = vadd.f32 %v333, %v356
      %358 = vdwg.mxu0
      %vm359 = vcmask 130048
      %360 = vst.msk [vmem:[%s222] sm:$0xff] %vm359, %v357
      %p361 = scmp.lt.s32.totalorder %s16, 1
      %s362 = scalar_select %p361, %s16, 1
      %s363 = smul.addr %s362, 8
      %s364 = scalar_lea.vmem %s5, %s363
      // Predicated region
      $region41: #{alignment_encoder_forward.3} parent=39 // pred_check
        %p365 = pneg %p144
      $region42: #{alignment_encoder_forward.3} parent=39 // pred_check_branch
        %367 = sbr.rel (%p365) target = $region44
      $region43: #{alignment_encoder_forward.3} parent=39 // pred_region
        _
      $region44: #{alignment_encoder_forward.3} parent=39 // pred_fallthru
        _
    $region40: #{alignment_encoder_forward.3} parent=5 // pred_fallthru
      _
    %p368 = scmp.le.s32.totalorder 2, %s11
    // Predicated region
    $region45: #{alignment_encoder_forward.3} parent=5 // pred_check
      %p369 = pneg %p368
    $region46: #{alignment_encoder_forward.3} parent=5 // pred_check_branch
      %371 = sbr.rel (%p369) target = $region48
    $region47: #{alignment_encoder_forward.3} parent=5 // pred_region
      %s372 = ssub.s32 %s11, 2
      // Predicated region
      $region49: #{alignment_encoder_forward.3} parent=47 // pred_check
        %p373 = pneg %p150
      $region50: #{alignment_encoder_forward.3} parent=47 // pred_check_branch
        %375 = sbr.rel (%p373) target = $region52
      $region51: #{alignment_encoder_forward.3} parent=47 // pred_region
        %p376 = scmp.lt.s32.totalorder %s17, 1
        %s377 = scalar_select %p376, %s17, 1
        %s378 = smul.addr %s377, 8
        %s379 = scalar_lea.vmem %s5, %s378
      $region52: #{alignment_encoder_forward.3} parent=47 // pred_fallthru
        _
    $region48: #{alignment_encoder_forward.3} parent=5 // pred_fallthru
      _
  $region6: #{alignment_encoder_forward.3} parent=0 // loop_footer
    %s15 = sadd.s32 1, %s11
  $region7: #{alignment_encoder_forward.3} parent=0 // loop_footer_branch
    %10 = sbr.rel target = $region3
  $region8: #{alignment_encoder_forward.3} parent=0 // loop_exit
    _

// kernel: alignment_encoder_forward.5
$region0: #{alignment_encoder_forward.5}
  #allocation0 [shape = 'u32[]', space=smem, size = 0x4, offset = 0x4, fixed_abs, tag = 'smem constant byte address 0x4 - core index']
  #allocation1 [shape = 'u32[72,128]{1,0:T(1,128)}', space=vmem, size = 0x9000, scoped, tag = 'internal scratch']
  %s0 = inlined_call_operand.vmem [shape: f32[2,16,16], index: 0, kind: input, shape index: {}]
  %s1 = inlined_call_operand.vmem [shape: f32[2,8,16], index: 1, kind: input, shape index: {}]
  %s2 = inlined_call_operand.vmem [shape: f32[2,16,8], index: 2, kind: output, shape index: {0}]
  %s3 = inlined_call_operand.vmem [shape: f32[2,16,8], index: 3, kind: output, shape index: {1}]
  %4 = xla_tuple %s2, %s3
  %s5 = sld [smem:[#allocation0]]
  $region49: #{alignment_encoder_forward.5} parent=0
    _
  %s7 = ssub.s32 1, %s5
  %s8 = scalar_select 0, %s7, %s5
  loop: start=0, step=1, limit=4
  $region2: #{alignment_encoder_forward.5} parent=0 // loop_pre_header
    _
  $region3: #{alignment_encoder_forward.5} parent=0 // loop_header
    %s10 = sphi 0, %s14
    %p11 = scmp.ge.s32.totalorder %s10, 4
    %s17 = sphi 0, %s29
    %s18 = sphi 0, %s25
    %s19 = sphi 0, %s17
    %s20 = sphi 0, %s18
    %s21 = sphi 0, %s19
    %s22 = sphi 0, %s20
    %s34 = sphi 0, %s36
    %s37 = sphi 0, %s34
    %s38 = sphi 0, %s37
    %s54 = sphi 0, %s38
    %s60 = sphi 0, %s62
    %s63 = sphi 0, %s60
    %s64 = sphi 0, %s63
    %s80 = sphi 0, %s64
    %s88 = sphi 0, %s90
    %s91 = sphi 0, %s88
    %s92 = sphi 0, %s91
    %s108 = sphi 0, %s92
    %s116 = sphi 0, %s118
    %s119 = sphi 0, %s116
    %s120 = sphi 0, %s119
    %s136 = sphi 0, %s120
  $region4: #{alignment_encoder_forward.5} parent=0 // loop_header_branch
    %13 = sbr.rel (%p11) target = $region8
  $region5: #{alignment_encoder_forward.5} parent=0 // loop_body
    %s15 = ssub.s32 %s10, 1
    %s16 = ssub.s32 %s10, 2
    %s23 = sadd.s32 1, %s18
    %p24 = scmp.ge.s32.totalorder %s23, 1
    %s25 = scalar_select %p24, 0, %s23
    %s26 = sadd.s32 1, %s17
    %s27 = scalar_select %p24, %s26, %s17
    %p28 = scmp.ge.s32.totalorder %s27, 2
    %s29 = scalar_select %p28, 0, %s27
    %s30 = ssub.s32 %s17, %s29
    %s31 = ssub.s32 %s18, %s25
    %s32 = sor.u32 %s30, %s31
    %p33 = scmp.eq.s32.totalorder %s32, 0
    %s35 = sadd.s32 %s34, 1
    %s36 = scalar_select %p33, %s34, %s35
    %p39 = pneg %p33
    %p40 = scmp.eq.s32.totalorder %s10, 1
    %p41 = por %p39, %p40
    %p42 = scmp.ne.s32.totalorder %s34, %s37
    %p43 = scmp.eq.s32.totalorder %s10, 0
    %p44 = por %p42, %p43
    %p45 = scmp.ne.s32.totalorder %s34, %s37
    %p46 = scmp.eq.s32.totalorder %s15, 1
    %p47 = por %p45, %p46
    %p48 = scmp.ne.s32.totalorder %s37, %s38
    %p49 = scmp.eq.s32.totalorder %s15, 0
    %p50 = por %p48, %p49
    %p51 = scmp.ne.s32.totalorder %s37, %s38
    %p52 = scmp.eq.s32.totalorder %s16, 1
    %p53 = por %p51, %p52
    %p55 = scmp.ne.s32.totalorder %s38, %s54
    %p56 = scmp.eq.s32.totalorder %s16, 0
    %p57 = por %p55, %p56
    %s58 = ssub.s32 %s17, %s29
    %p59 = scmp.eq.s32.totalorder %s58, 0
    %s61 = sadd.s32 %s60, 1
    %s62 = scalar_select %p59, %s60, %s61
    %p65 = pneg %p59
    %p66 = scmp.eq.s32.totalorder %s10, 1
    %p67 = por %p65, %p66
    %p68 = scmp.ne.s32.totalorder %s60, %s63
    %p69 = scmp.eq.s32.totalorder %s10, 0
    %p70 = por %p68, %p69
    %p71 = scmp.ne.s32.totalorder %s60, %s63
    %p72 = scmp.eq.s32.totalorder %s15, 1
    %p73 = por %p71, %p72
    %p74 = scmp.ne.s32.totalorder %s63, %s64
    %p75 = scmp.eq.s32.totalorder %s15, 0
    %p76 = por %p74, %p75
    %p77 = scmp.ne.s32.totalorder %s63, %s64
    %p78 = scmp.eq.s32.totalorder %s16, 1
    %p79 = por %p77, %p78
    %p81 = scmp.ne.s32.totalorder %s64, %s80
    %p82 = scmp.eq.s32.totalorder %s16, 0
    %p83 = por %p81, %p82
    %s84 = ssub.s32 %s17, %s29
    %s85 = ssub.s32 %s18, %s25
    %s86 = sor.u32 %s84, %s85
    %p87 = scmp.eq.s32.totalorder %s86, 0
    %s89 = sadd.s32 %s88, 1
    %s90 = scalar_select %p87, %s88, %s89
    %p93 = pneg %p87
    %p94 = scmp.eq.s32.totalorder %s10, 1
    %p95 = por %p93, %p94
    %p96 = scmp.ne.s32.totalorder %s88, %s91
    %p97 = scmp.eq.s32.totalorder %s10, 0
    %p98 = por %p96, %p97
    %p99 = scmp.ne.s32.totalorder %s88, %s91
    %p100 = scmp.eq.s32.totalorder %s15, 1
    %p101 = por %p99, %p100
    %p102 = scmp.ne.s32.totalorder %s91, %s92
    %p103 = scmp.eq.s32.totalorder %s15, 0
    %p104 = por %p102, %p103
    %p105 = scmp.ne.s32.totalorder %s91, %s92
    %p106 = scmp.eq.s32.totalorder %s16, 1
    %p107 = por %p105, %p106
    %p109 = scmp.ne.s32.totalorder %s92, %s108
    %p110 = scmp.eq.s32.totalorder %s16, 0
    %p111 = por %p109, %p110
    %s112 = ssub.s32 %s17, %s29
    %s113 = ssub.s32 %s18, %s25
    %s114 = sor.u32 %s112, %s113
    %p115 = scmp.eq.s32.totalorder %s114, 0
    %s117 = sadd.s32 %s116, 1
    %s118 = scalar_select %p115, %s116, %s117
    %p121 = pneg %p115
    %p122 = scmp.eq.s32.totalorder %s10, 1
    %p123 = por %p121, %p122
    %p124 = scmp.ne.s32.totalorder %s116, %s119
    %p125 = scmp.eq.s32.totalorder %s10, 0
    %p126 = por %p124, %p125
    %p127 = scmp.ne.s32.totalorder %s116, %s119
    %p128 = scmp.eq.s32.totalorder %s15, 1
    %p129 = por %p127, %p128
    %p130 = scmp.ne.s32.totalorder %s119, %s120
    %p131 = scmp.eq.s32.totalorder %s15, 0
    %p132 = por %p130, %p131
    %p133 = scmp.ne.s32.totalorder %s119, %s120
    %p134 = scmp.eq.s32.totalorder %s16, 1
    %p135 = por %p133, %p134
    %p137 = scmp.ne.s32.totalorder %s120, %s136
    %p138 = scmp.eq.s32.totalorder %s16, 0
    %p139 = por %p137, %p138
    %p140 = scmp.le.s32.totalorder 1, %s10
    %p141 = scmp.lt.s32.totalorder %s10, 3
    %p142 = pnand %p140, %p141
    %p143 = pneg %p142
    // Predicated region
    $region9: #{alignment_encoder_forward.5} parent=5 // pred_check
      _
    $region10: #{alignment_encoder_forward.5} parent=5 // pred_check_branch
      %145 = sbr.rel (%p142) target = $region12
    $region11: #{alignment_encoder_forward.5} parent=5 // pred_region
      %s146 = ssub.s32 %s10, 1
    $region12: #{alignment_encoder_forward.5} parent=5 // pred_fallthru
      _
    %p147 = scmp.lt.s32.totalorder %s10, 2
    // Predicated region
    $region13: #{alignment_encoder_forward.5} parent=5 // pred_check
      %p148 = pneg %p147
    $region14: #{alignment_encoder_forward.5} parent=5 // pred_check_branch
      %150 = sbr.rel (%p148) target = $region16
    $region15: #{alignment_encoder_forward.5} parent=5 // pred_region
      // Predicated region
      $region17: #{alignment_encoder_forward.5} parent=15 // pred_check
        %p151 = pneg %p44
      $region18: #{alignment_encoder_forward.5} parent=15 // pred_check_branch
        %153 = sbr.rel (%p151) target = $region20
      $region19: #{alignment_encoder_forward.5} parent=15 // pred_region
        %s154 = smul.u32 2, %s18
        %p155 = scmp.lt.s32.totalorder %s17, 1
        %s156 = scalar_select %p155, %s17, 1
        %p157 = scmp.lt.s32.totalorder %s154, 1
        %s158 = scalar_select %p157, %s154, 1
        %s159 = smul.addr %s156, 2
        %s160 = sadd.s32 %s158, %s159
        %s161 = smul.addr %s160, 8
        %s162 = scalar_lea.vmem %s0, %s161
        %s163 = smul.u32 2, %s18
      $region20: #{alignment_encoder_forward.5} parent=15 // pred_fallthru
        _
      // Predicated region
      $region21: #{alignment_encoder_forward.5} parent=15 // pred_check
        %p164 = pneg %p70
      $region22: #{alignment_encoder_forward.5} parent=15 // pred_check_branch
        %166 = sbr.rel (%p164) target = $region24
      $region23: #{alignment_encoder_forward.5} parent=15 // pred_region
        %p167 = scmp.lt.s32.totalorder %s17, 1
        %s168 = scalar_select %p167, %s17, 1
        %s169 = smul.addr %s168, 8
        %s170 = scalar_lea.vmem %s1, %s169
      $region24: #{alignment_encoder_forward.5} parent=15 // pred_fallthru
        _
    $region16: #{alignment_encoder_forward.5} parent=5 // pred_fallthru
      _
    %p171 = scmp.le.s32.totalorder 1, %s10
    %p172 = scmp.lt.s32.totalorder %s10, 3
    %p173 = pnand %p171, %p172
    %p174 = pneg %p173
    // Predicated region
    $region25: #{alignment_encoder_forward.5} parent=5 // pred_check
      _
    $region26: #{alignment_encoder_forward.5} parent=5 // pred_check_branch
      %176 = sbr.rel (%p173) target = $region28
    $region27: #{alignment_encoder_forward.5} parent=5 // pred_region
      %s177 = ssub.s32 %s10, 1
      %s178 = smul.u32 2, %s20
      %p179 = scmp.lt.s32.totalorder %s19, 1
      %s180 = scalar_select %p179, %s19, 1
      %p181 = scmp.lt.s32.totalorder %s178, 1
      %s182 = scalar_select %p181, %s178, 1
      %s183 = smul.addr %s180, 2
      %s184 = sadd.s32 %s182, %s183
      %s185 = smul.addr %s184, 8
      %s186 = scalar_lea.vmem %s0, %s185
      %p187 = pneg %p50
      %p188 = pneg %p47
      %p189 = scmp.lt.s32.totalorder %s19, 1
      %s190 = scalar_select %p189, %s19, 1
      %s191 = smul.addr %s190, 8
      %s192 = scalar_lea.vmem %s1, %s191
      %p193 = pneg %p76
      %p194 = pneg %p73
      %p195 = pneg %p104
      %p196 = pneg %p101
      %s197 = smul.u32 2, %s20
      %p198 = scmp.lt.s32.totalorder %s19, 1
      %s199 = scalar_select %p198, %s19, 1
      %p200 = scmp.lt.s32.totalorder %s197, 1
      %s201 = scalar_select %p200, %s197, 1
      %s202 = smul.addr %s199, 2
      %s203 = sadd.s32 %s201, %s202
      %s204 = smul.addr %s203, 8
      %s205 = scalar_lea.vmem %s2, %s204
      %p206 = pneg %p132
      %p207 = pneg %p129
      %s208 = smul.u32 2, %s20
      %p209 = scmp.lt.s32.totalorder %s19, 1
      %s210 = scalar_select %p209, %s19, 1
      %p211 = scmp.lt.s32.totalorder %s208, 1
      %s212 = scalar_select %p211, %s208, 1
      %s213 = smul.addr %s210, 2
      %s214 = sadd.s32 %s212, %s213
      %s215 = smul.addr %s214, 8
      %s216 = scalar_lea.vmem %s3, %s215
      %s217 = smul.u32 2, %s20
      %p218 = scmp.lt.s32.totalorder %s19, 1
      %s219 = scalar_select %p218, %s19, 1
      %p220 = scmp.lt.s32.totalorder %s217, 1
      %s221 = scalar_select %p220, %s217, 1
      %s222 = smul.addr %s219, 2
      %s223 = sadd.s32 %s221, %s222
      %s224 = smul.addr %s223, 8
      %s225 = scalar_lea.vmem %s0, %s224
      %s226 = smul.u32 2, %s20
      %p227 = scmp.lt.s32.totalorder %s19, 1
      %s228 = scalar_select %p227, %s19, 1
      %s229 = smul.addr %s228, 8
      %s230 = scalar_lea.vmem %s1, %s229
      %s231 = smul.u32 2, %s20
      %p232 = scmp.lt.s32.totalorder %s19, 1
      %s233 = scalar_select %p232, %s19, 1
      %p234 = scmp.lt.s32.totalorder %s231, 1
      %s235 = scalar_select %p234, %s231, 1
      %s236 = smul.addr %s233, 2
      %s237 = sadd.s32 %s235, %s236
      %s238 = smul.addr %s237, 8
      %s239 = scalar_lea.vmem %s2, %s238
      %s240 = smul.u32 2, %s20
      %s241 = smul.u32 2, %s20
      %p242 = scmp.lt.s32.totalorder %s19, 1
      %s243 = scalar_select %p242, %s19, 1
      %p244 = scmp.lt.s32.totalorder %s241, 1
      %s245 = scalar_select %p244, %s241, 1
      %s246 = smul.addr %s243, 2
      %s247 = sadd.s32 %s245, %s246
      %s248 = smul.addr %s247, 8
      %s249 = scalar_lea.vmem %s3, %s248
      %s250 = smul.u32 2, %s20
      %v251 = vld [vmem:[%s225] sm:$0xff]
      %v252 = vld [vmem:[%s225 + $0x8] sm:$0xff]
      %v253 = vld [vmem:[%s230] sm:$0xff]
      %v254 = vmul.f32 %v251, %v251
      %v255 = vmul.f32 %v252, %v252
      %vm256 = vcmask 130048
      %v257 = vsel %vm256, %v254, 0.0
      %258 = vadd.xlane.f32.xlu0 %v257
      %v259 = vpop.xlane.xlu0 %258
      %v260 = vsel %vm256, %v255, 0.0
      %261 = vadd.xlane.f32.xlu0 %v260
      %v262 = vpop.xlane.xlu0 %261
      %v263 = vmul.f32 %v253, %v253
      %v265 = vsel %vm256, 1.0, 0
      %v268 = vsel %vm256, %v263, 0
      %270 = vmatpush.xpose.msra.mxu0 0.0
      %271 = vmatpush.xpose.msra.mxu0 0.0
      %272 = vmatpush.xpose.msra.mxu0 0.0
      %273 = vmatpush.xpose.msra.mxu0 0.0
      %274 = vmatpush.xpose.msra.mxu0 0.0
      %275 = vmatpush.xpose.msra.mxu0 0.0
      %276 = vmatpush.xpose.msra.mxu0 0.0
      %277 = vmatpush.xpose.msra.mxu0 0.0
      %278 = vmatpush.xpose.msra.mxu0 0.0
      %279 = vmatpush.xpose.msra.mxu0 0.0
      %280 = vmatpush.xpose.msra.mxu0 0.0
      %281 = vmatpush.xpose.msra.mxu0 0.0
      %282 = vmatpush.xpose.msra.mxu0 0.0
      %283 = vmatpush.xpose.msra.mxu0 0.0
      %284 = vmatpush.xpose.msra.mxu0 0.0
      %285 = vmatpush.xpose.msra.mxu0 %v268
      %286 = vmatmul.f32.gmra.mxu0 %v265
      %v287 = vpop.f32.mrf.mxu0
      %v288 = vadd.f32 0.0, %v287
      %289 = vdwg.mxu0
      %v291 = vsel %vm256, %v251, 0
      %v294 = vsel %vm256, %v252, 0
      %v297 = vsel %vm256, %v253, 0
      %299 = vmatpush.xpose.msra.mxu0 0.0
      %300 = vmatpush.xpose.msra.mxu0 0.0
      %301 = vmatpush.xpose.msra.mxu0 0.0
      %302 = vmatpush.xpose.msra.mxu0 0.0
      %303 = vmatpush.xpose.msra.mxu0 0.0
      %304 = vmatpush.xpose.msra.mxu0 0.0
      %305 = vmatpush.xpose.msra.mxu0 0.0
      %306 = vmatpush.xpose.msra.mxu0 0.0
      %307 = vmatpush.xpose.msra.mxu0 0.0
      %308 = vmatpush.xpose.msra.mxu0 0.0
      %309 = vmatpush.xpose.msra.mxu0 0.0
      %310 = vmatpush.xpose.msra.mxu0 0.0
      %311 = vmatpush.xpose.msra.mxu0 0.0
      %312 = vmatpush.xpose.msra.mxu0 0.0
      %313 = vmatpush.xpose.msra.mxu0 0.0
      %314 = vmatpush.xpose.msra.mxu0 %v297
      %315 = vmatmul.f32.gmra.mxu0 %v291
      %v316 = vpop.f32.mrf.mxu0
      %v317 = vadd.f32 0.0, %v316
      %318 = vmatmul.f32.gmra.mxu0 %v294
      %v319 = vpop.f32.mrf.mxu0
      %v320 = vadd.f32 0.0, %v319
      %321 = vdwg.mxu0
      %v322 = vperm.slane %v288, 0
      %v323 = vadd.f32 %v259, %v322
      %v324 = vadd.f32 %v262, %v322
      %v325 = vmul.f32 %v317, 2.0
      %v326 = vmul.f32 %v320, 2.0
      %v327 = vsub.f32 %v323, %v325
      %v328 = vsub.f32 %v324, %v326
      %v329 = vmax.f32 %v327, 0.0
      %v330 = vmax.f32 %v328, 0.0
      %v331 = vmul.f32 %v329, -0.0005
      %v332 = vmul.f32 %v330, -0.0005
      %vm333 = vcmask 64512
      %334 = vst.msk [vmem:[%s249] sm:$0xff] %vm333, %v331
      %335 = vst.msk [vmem:[%s249 + $0x8] sm:$0xff] %vm333, %v332
      %v336 = vsel %vm333, %v331, -inf
      %337 = vmax.xlane.f32.xlu0 %v336
      %v338 = vpop.xlane.xlu0 %337
      %v339 = vsel %vm333, %v332, -inf
      %340 = vmax.xlane.f32.xlu0 %v339
      %v341 = vpop.xlane.xlu0 %340
      %v342 = vsub.f32 %v331, %v338
      %v343 = vsub.f32 %v332, %v341
      %v344 = vmul.f32 %v342, 1.442695
      %v345 = vpow.pop %v344
      %v346 = vmul.f32 %v343, 1.442695
      %v347 = vpow.pop %v346
      %v348 = vsel %vm333, %v345, 0.0
      %349 = vadd.xlane.f32.xlu0 %v348
      %v350 = vpop.xlane.xlu0 %349
      %v351 = vsel %vm333, %v347, 0.0
      %352 = vadd.xlane.f32.xlu0 %v351
      %v353 = vpop.xlane.xlu0 %352
      %v354 = vrcp.pop %v350
      %v355 = vrcp.pop %v353
      %v356 = vmul.f32 %v350, %v354
      %v357 = vmul.f32 %v353, %v355
      %v358 = vsub.f32 2.0, %v356
      %v359 = vsub.f32 2.0, %v357
      %v360 = vmul.f32 %v354, %v358
      %v361 = vmul.f32 %v355, %v359
      %v362 = vmul.f32 %v345, %v360
      %v363 = vmul.f32 %v347, %v361
      %364 = vst.msk [vmem:[%s239] sm:$0xff] %vm333, %v362
      %365 = vst.msk [vmem:[%s239 + $0x8] sm:$0xff] %vm333, %v363
      %s366 = smul.u32 2, %s20
      %p367 = scmp.lt.s32.totalorder %s19, 1
      %s368 = scalar_select %p367, %s19, 1
      %p369 = scmp.lt.s32.totalorder %s366, 1
      %s370 = scalar_select %p369, %s366, 1
      %s371 = smul.addr %s368, 2
      %s372 = sadd.s32 %s370, %s371
      %s373 = smul.addr %s372, 8
      %s374 = scalar_lea.vmem %s2, %s373
      %s375 = smul.u32 2, %s20
      %p376 = scmp.lt.s32.totalorder %s19, 1
      %s377 = scalar_select %p376, %s19, 1
      %p378 = scmp.lt.s32.totalorder %s375, 1
      %s379 = scalar_select %p378, %s375, 1
      %s380 = smul.addr %s377, 2
      %s381 = sadd.s32 %s379, %s380
      %s382 = smul.addr %s381, 8
      %s383 = scalar_lea.vmem %s3, %s382
      // Predicated region
      $region29: #{alignment_encoder_forward.5} parent=27 // pred_check
        %p384 = pneg %p101
      $region30: #{alignment_encoder_forward.5} parent=27 // pred_check_branch
        %386 = sbr.rel (%p384) target = $region32
      $region31: #{alignment_encoder_forward.5} parent=27 // pred_region
        %s387 = smul.u32 2, %s20
      $region32: #{alignment_encoder_forward.5} parent=27 // pred_fallthru
        _
      // Predicated region
      $region33: #{alignment_encoder_forward.5} parent=27 // pred_check
        %p388 = pneg %p129
      $region34: #{alignment_encoder_forward.5} parent=27 // pred_check_branch
        %390 = sbr.rel (%p388) target = $region36
      $region35: #{alignment_encoder_forward.5} parent=27 // pred_region
        %s391 = smul.u32 2, %s20
      $region36: #{alignment_encoder_forward.5} parent=27 // pred_fallthru
        _
    $region28: #{alignment_encoder_forward.5} parent=5 // pred_fallthru
      _
    %p392 = scmp.le.s32.totalorder 2, %s10
    // Predicated region
    $region37: #{alignment_encoder_forward.5} parent=5 // pred_check
      %p393 = pneg %p392
    $region38: #{alignment_encoder_forward.5} parent=5 // pred_check_branch
      %395 = sbr.rel (%p393) target = $region40
    $region39: #{alignment_encoder_forward.5} parent=5 // pred_region
      %s396 = ssub.s32 %s10, 2
      // Predicated region
      $region41: #{alignment_encoder_forward.5} parent=39 // pred_check
        %p397 = pneg %p107
      $region42: #{alignment_encoder_forward.5} parent=39 // pred_check_branch
        %399 = sbr.rel (%p397) target = $region44
      $region43: #{alignment_encoder_forward.5} parent=39 // pred_region
        %s400 = smul.u32 2, %s22
        %p401 = scmp.lt.s32.totalorder %s21, 1
        %s402 = scalar_select %p401, %s21, 1
        %p403 = scmp.lt.s32.totalorder %s400, 1
        %s404 = scalar_select %p403, %s400, 1
        %s405 = smul.addr %s402, 2
        %s406 = sadd.s32 %s404, %s405
        %s407 = smul.addr %s406, 8
        %s408 = scalar_lea.vmem %s2, %s407
      $region44: #{alignment_encoder_forward.5} parent=39 // pred_fallthru
        _
      // Predicated region
      $region45: #{alignment_encoder_forward.5} parent=39 // pred_check
        %p409 = pneg %p135
      $region46: #{alignment_encoder_forward.5} parent=39 // pred_check_branch
        %411 = sbr.rel (%p409) target = $region48
      $region47: #{alignment_encoder_forward.5} parent=39 // pred_region
        %s412 = smul.u32 2, %s22
        %p413 = scmp.lt.s32.totalorder %s21, 1
        %s414 = scalar_select %p413, %s21, 1
        %p415 = scmp.lt.s32.totalorder %s412, 1
        %s416 = scalar_select %p415, %s412, 1
        %s417 = smul.addr %s414, 2
        %s418 = sadd.s32 %s416, %s417
        %s419 = smul.addr %s418, 8
        %s420 = scalar_lea.vmem %s3, %s419
      $region48: #{alignment_encoder_forward.5} parent=39 // pred_fallthru
        _
    $region40: #{alignment_encoder_forward.5} parent=5 // pred_fallthru
      _
  $region6: #{alignment_encoder_forward.5} parent=0 // loop_footer
    %s14 = sadd.s32 1, %s10
  $region7: #{alignment_encoder_forward.5} parent=0 // loop_footer_branch
    %9 = sbr.rel target = $region3
  $region8: #{alignment_encoder_forward.5} parent=0 // loop_exit
    _

</llo_original>
